<compile_context>
chip_gen: v6e
topology: v6e:2x2x1
jax: 0.10.0
libtpu: 0.0.40
codegen_flags: <defaults>
</compile_context>

<pallas_src>
import numpy as np
import jax
import jax.numpy as jnp
from jax.experimental import pallas as pl
from jax.experimental.pallas import tpu as pltpu


def _interp_matrix(in_size: int, out_size: int) -> np.ndarray:
    """Dense 1-D linear-interpolation matrix (out_size, in_size), matching
    torch F.interpolate(mode='linear', align_corners=False) half-pixel semantics."""
    W = np.zeros((out_size, in_size), dtype=np.float64)
    scale = in_size / out_size
    for o in range(out_size):
        src = (o + 0.5) * scale - 0.5
        src = max(src, 0.0)                      # PyTorch clamps negative src to 0
        i0 = min(int(np.floor(src)), in_size - 1)
        i1 = min(i0 + 1, in_size - 1)
        lam = src - i0
        W[o, i0] += 1.0 - lam
        W[o, i1] += lam
    return W.astype(np.float32)


def _sublane_multiple(dtype) -> int:
    """Rows-per-sublane-tile for a dtype: 8 (f32), 16 (bf16), 32 (int8/fp8)."""
    return max(8, 32 // jnp.dtype(dtype).itemsize)


def _vmem_capacity_bytes() -> int:
    """Physical VMEM of the local chip; conservative 64 MiB (v7x) if the query fails."""
    try:
        return int(pltpu.get_tpu_info().vmem_capacity_bytes)
    except Exception:
        return 64 * 1024 * 1024


def _choose_batch(nc: int, di: int, do: int, per_slice_bytes: int,
                  budget_bytes: int, sublane: int) -> int:
    """How many (n,c) slices to process per grid step (must divide nc)."""
    divs = [d for d in range(1, nc + 1) if nc % d == 0]

    def legal(b):
        # Block rows must be sublane-tile aligned unless the block covers the full axis.
        return b == nc or ((b * di) % sublane == 0 and (b * do) % sublane == 0)

    legal_divs = [b for b in divs if legal(b)] or [nc]
    fits = [b for b in legal_divs if b * per_slice_bytes <= budget_bytes]
    if not fits:
        # Don't fall back to one giant full-extent block; take the smallest legal block
        # so pipelining / grid parallelism survive even for awkward shapes.
        return min(legal_divs)
    # Prefer an even number of steps (>=2) so a "parallel" grid balances across the two
    # v7x TensorCores; then >=2 steps; then the largest block that fits.
    even = [b for b in fits if (nc // b) >= 2 and (nc // b) % 2 == 0]
    multi = [b for b in fits if (nc // b) >= 2]
    if even:
        return max(even)
    if multi:
        return max(multi)
    return max(fits)


def _trilinear_kernel(x_ref, khw_ref, wd_ref, o_ref):
    # x_ref : (B*Di, Hi*Wi)   B (n,c) slices, rows = (b major, d minor)
    # khw_ref: (Hi*Wi, Ho*Wo) kron(Wh, Ww)^T, f32, grid-invariant
    # wd_ref : (B, Do, Di)    Wd broadcast over the slice batch, f32, grid-invariant
    # o_ref : (B*Do, Ho*Wo)   lane-dense output block
    b, do_, di = wd_ref.shape
    howo = khw_ref.shape[1]

    # Stage 1: H/W interpolation (contraction over Hi*Wi, f32 accumulation).
    xv = x_ref[...].astype(jnp.float32)
    t = jnp.dot(xv, khw_ref[...], preferred_element_type=jnp.float32)      # (B*Di, Ho*Wo)

    # Stage 2: D interpolation per slice — batched dot, linear in B (contraction dim = Di).
    t3 = t.reshape(b, di, howo)
    out = jax.lax.dot_general(
        wd_ref[...], t3,
        dimension_numbers=(((2,), (1,)), ((0,), (0,))),
        preferred_element_type=jnp.float32)                                # (B, Do, Ho*Wo)

    o_ref[...] = out.reshape(b * do_, howo).astype(o_ref.dtype)


def interpolate_trilinear(x, output_shape):
    """Equivalent of F.interpolate(x, size=output_shape[2:], mode='trilinear',
    align_corners=False) for 5-D NCDHW input."""
    N, C, Di, Hi, Wi = x.shape
    Do, Ho, Wo = output_shape[2:]
    NC = N * C
    HiWi, HoWo = Hi * Wi, Ho * Wo
    dtype = x.dtype
    itemsize = jnp.dtype(dtype).itemsize

    # 1-D interpolation matrices (exact PyTorch half-pixel semantics), kept in f32.
    Wd = _interp_matrix(Di, Do)
    Wh = _interp_matrix(Hi, Ho)
    Ww = _interp_matrix(Wi, Wo)
    khw = jnp.asarray(np.kron(Wh, Ww).T, dtype=jnp.float32)                # (Hi*Wi, Ho*Wo)

    # --- VMEM budgeting (generation-aware, weights accounted) -------------------------
    vmem_cap = _vmem_capacity_bytes()
    usable = (vmem_cap * 3) // 4          # 96 MiB on v5e/v6e (128 MiB), 48 MiB on v7x (64 MiB)
    khw_bytes = HiWi * HoWo * 4           # single-buffered constant weight
    block_budget = max(usable - khw_bytes - (2 << 20), 4 << 20)

    per_slice = (2 * (Di * HiWi + Do * HoWo) * itemsize   # double-buffered in/out blocks
                 + Di * HiWi * 4                          # f32 upcast of the x block
                 + (Di + Do) * HoWo * 4                   # f32 stage intermediates
                 + Do * Di * 4)                           # per-slice share of wd weight

    sublane = _sublane_multiple(dtype)
    B = _choose_batch(NC, Di, Do, per_slice, block_budget, sublane)
    steps = NC // B

    wd_b = jnp.asarray(np.broadcast_to(Wd, (B, Do, Di)).copy(), dtype=jnp.float32)

    x2d = x.reshape(NC * Di, HiWi)

    # Memory-bound op (output bytes = (Do*Ho*Wo)/(Di*Hi*Wi) x input bytes).
    flops = NC * (2 * Di * HiWi * HoWo + 2 * Do * Di * HoWo)
    bytes_accessed = (NC * Di * HiWi * itemsize + NC * Do * HoWo * itemsize
                      + khw_bytes + wd_b.size * 4)

    def run(single_buffer_weights: bool):
        wkw = dict(pipeline_mode=pl.Buffered(1)) if single_buffer_weights else {}
        return pl.pallas_call(
            _trilinear_kernel,
            out_shape=jax.ShapeDtypeStruct((NC * Do, HoWo), dtype),
            grid_spec=pltpu.PrefetchScalarGridSpec(
                num_scalar_prefetch=0,
                grid=(steps,),
                in_specs=[
                    pl.BlockSpec((B * Di, HiWi), lambda i: (i, 0)),
                    pl.BlockSpec((HiWi, HoWo), lambda i: (0, 0), **wkw),
                    pl.BlockSpec((B, Do, Di), lambda i: (0, 0, 0), **wkw),
                ],
                out_specs=pl.BlockSpec((B * Do, HoWo), lambda i: (i, 0)),
            ),
            compiler_params=pltpu.CompilerParams(
                dimension_semantics=("parallel",),
                vmem_limit_bytes=int(usable),
            ),
            cost_estimate=pl.CostEstimate(
                flops=int(flops), transcendentals=0,
                bytes_accessed=int(bytes_accessed)),
        )(x2d, khw, wd_b)

    try:
        out2d = run(True)          # single-buffered constant weights
    except Exception:
        out2d = run(False)         # conservative fallback: default double-buffering

    return out2d.reshape(N, C, Do, Ho, Wo)


if __name__ == "__main__":
    key = jax.random.PRNGKey(0)
    N, C, D, H, W = 2, 4, 8, 8, 8
    x = jax.random.normal(key, (N, C, D, H, W), dtype=jnp.float32)

    output_shape = (N, C, 2 * D, 2 * H, 2 * W)   # the "2x2x2" case
    y = interpolate_trilinear(x, output_shape)
    y = jax.block_until_ready(y)

    assert y.shape == output_shape, y.shape

    # Reference: jax.image.resize with half-pixel centers matches PyTorch trilinear
    # align_corners=False for pure upsampling.
    ref = jax.image.resize(x, output_shape, method="trilinear")
    np.testing.assert_allclose(np.asarray(y), np.asarray(ref), rtol=1e-5, atol=1e-5)

    print("KERNEL_OK")
</pallas_src>

<mosaic_0001>
module attributes {stable_mosaic.version = 11 : i64} {
  func.func @_trilinear_kernel(%arg0: i32, %arg1: memref<32x64xf32, #tpu.memory_space<vmem>>, %arg2: memref<64x256xf32, #tpu.memory_space<vmem>>, %arg3: memref<4x16x8xf32, #tpu.memory_space<vmem>>, %arg4: memref<64x256xf32, #tpu.memory_space<vmem>>) attributes {dimension_semantics = [#tpu.dimension_semantics<parallel>], iteration_bounds = array<i64: 2>, scalar_prefetch = 0 : i64, scratch_operands = 0 : i64, tpu.core_type = #tpu.core_type<tc>, window_params = [{transform_indices = @transform_0, window_bounds = array<i64: 32, 64>}, {pipeline_mode = #tpu.pipeline_mode<synchronous>, transform_indices = @transform_1, window_bounds = array<i64: 64, 256>}, {pipeline_mode = #tpu.pipeline_mode<synchronous>, transform_indices = @transform_2, window_bounds = array<i64: 4, 16, 8>}, {transform_indices = @transform_3, window_bounds = array<i64: 64, 256>}]} {
    %c0 = arith.constant 0 : index
    %c0_0 = arith.constant 0 : index
    %0 = vector.load %arg1[%c0, %c0_0] : memref<32x64xf32, #tpu.memory_space<vmem>>, vector<32x64xf32>
    %c0_1 = arith.constant 0 : index
    %c0_2 = arith.constant 0 : index
    %1 = vector.load %arg2[%c0_1, %c0_2] : memref<64x256xf32, #tpu.memory_space<vmem>>, vector<64x256xf32>
    %cst = arith.constant dense<0.000000e+00> : vector<32x256xf32>
    %2 = tpu.matmul %0, %1, %cst {dimension_numbers = #tpu.dot_dimension_numbers<[1], [0], [0], [1], [0, 0, 1, 1], [], []>} : vector<32x64xf32>, vector<64x256xf32>, vector<32x256xf32> -> vector<32x256xf32>
    %3 = vector.shape_cast %2 : vector<32x256xf32> to vector<4x8x256xf32>
    %c0_3 = arith.constant 0 : index
    %c0_4 = arith.constant 0 : index
    %c0_5 = arith.constant 0 : index
    %4 = vector.load %arg3[%c0_3, %c0_4, %c0_5] : memref<4x16x8xf32, #tpu.memory_space<vmem>>, vector<4x16x8xf32>
    %cst_6 = arith.constant dense<0.000000e+00> : vector<4x16x256xf32>
    %5 = tpu.matmul %4, %3, %cst_6 {dimension_numbers = #tpu.dot_dimension_numbers<[2], [1], [1], [2], [0, 0, 0, 1, 1, 2], [0], [0]>} : vector<4x16x8xf32>, vector<4x8x256xf32>, vector<4x16x256xf32> -> vector<4x16x256xf32>
    %6 = vector.shape_cast %5 : vector<4x16x256xf32> to vector<64x256xf32>
    %c0_7 = arith.constant 0 : index
    %c0_8 = arith.constant 0 : index
    %7 = vector.load %arg4[%c0_7, %c0_8] : memref<64x256xf32, #tpu.memory_space<vmem>>, vector<64x256xf32>
    tpu.vector_store %arg4[%c0_7, %c0_8], %6 {strides = array<i32>} : memref<64x256xf32, #tpu.memory_space<vmem>>, vector<64x256xf32>,
    return
  }
  func.func @transform_0(%arg0: i32) -> (i32, i32) {
    %c0_i32 = arith.constant 0 : i32
    %c0_i32_0 = arith.constant 0 : i32
    return %arg0, %c0_i32 : i32, i32
  }
  func.func @transform_1(%arg0: i32) -> (i32, i32) {
    %c0_i32 = arith.constant 0 : i32
    %c0_i32_0 = arith.constant 0 : i32
    %c0_i32_1 = arith.constant 0 : i32
    return %c0_i32, %c0_i32_0 : i32, i32
  }
  func.func @transform_2(%arg0: i32) -> (i32, i32, i32) {
    %c0_i32 = arith.constant 0 : i32
    %c0_i32_0 = arith.constant 0 : i32
    %c0_i32_1 = arith.constant 0 : i32
    %c0_i32_2 = arith.constant 0 : i32
    return %c0_i32, %c0_i32_0, %c0_i32_1 : i32, i32, i32
  }
  func.func @transform_3(%arg0: i32) -> (i32, i32) {
    %c0_i32 = arith.constant 0 : i32
    %c0_i32_0 = arith.constant 0 : i32
    return %arg0, %c0_i32 : i32, i32
  }
}

module attributes {stable_mosaic.version = 11 : i64} {
  func.func @_trilinear_kernel(%arg0: i32, %arg1: memref<32x64xf32, #tpu.memory_space<vmem>>, %arg2: memref<64x256xf32, #tpu.memory_space<vmem>>, %arg3: memref<4x16x8xf32, #tpu.memory_space<vmem>>, %arg4: memref<64x256xf32, #tpu.memory_space<vmem>>) attributes {dimension_semantics = [#tpu.dimension_semantics<parallel>], iteration_bounds = array<i64: 2>, scalar_prefetch = 0 : i64, scratch_operands = 0 : i64, tpu.core_type = #tpu.core_type<tc>, window_params = [{transform_indices = @transform_0, window_bounds = array<i64: 32, 64>}, {pipeline_mode = #tpu.pipeline_mode<synchronous>, transform_indices = @transform_1, window_bounds = array<i64: 64, 256>}, {pipeline_mode = #tpu.pipeline_mode<synchronous>, transform_indices = @transform_2, window_bounds = array<i64: 4, 16, 8>}, {transform_indices = @transform_3, window_bounds = array<i64: 64, 256>}]} {
    %c0 = arith.constant 0 : index
    %c0_0 = arith.constant 0 : index
    %0 = vector.load %arg1[%c0, %c0_0] : memref<32x64xf32, #tpu.memory_space<vmem>>, vector<32x64xf32>
    %c0_1 = arith.constant 0 : index
    %c0_2 = arith.constant 0 : index
    %1 = vector.load %arg2[%c0_1, %c0_2] : memref<64x256xf32, #tpu.memory_space<vmem>>, vector<64x256xf32>
    %cst = arith.constant dense<0.000000e+00> : vector<32x256xf32>
    %2 = tpu.matmul %0, %1, %cst {dimension_numbers = #tpu.dot_dimension_numbers<[1], [0], [0], [1], [0, 0, 1, 1], [], []>} : vector<32x64xf32>, vector<64x256xf32>, vector<32x256xf32> -> vector<32x256xf32>
    %3 = vector.shape_cast %2 : vector<32x256xf32> to vector<4x8x256xf32>
    %c0_3 = arith.constant 0 : index
    %c0_4 = arith.constant 0 : index
    %c0_5 = arith.constant 0 : index
    %4 = vector.load %arg3[%c0_3, %c0_4, %c0_5] : memref<4x16x8xf32, #tpu.memory_space<vmem>>, vector<4x16x8xf32>
    %cst_6 = arith.constant dense<0.000000e+00> : vector<4x16x256xf32>
    %5 = tpu.matmul %4, %3, %cst_6 {dimension_numbers = #tpu.dot_dimension_numbers<[2], [1], [1], [2], [0, 0, 0, 1, 1, 2], [0], [0]>} : vector<4x16x8xf32>, vector<4x8x256xf32>, vector<4x16x256xf32> -> vector<4x16x256xf32>
    %6 = vector.shape_cast %5 : vector<4x16x256xf32> to vector<64x256xf32>
    %c0_7 = arith.constant 0 : index
    %c0_8 = arith.constant 0 : index
    %7 = vector.load %arg4[%c0_7, %c0_8] : memref<64x256xf32, #tpu.memory_space<vmem>>, vector<64x256xf32>
    tpu.vector_store %arg4[%c0_7, %c0_8], %6 {strides = array<i32>} : memref<64x256xf32, #tpu.memory_space<vmem>>, vector<64x256xf32>,
    return
  }
  func.func @transform_0(%arg0: i32) -> (i32, i32) {
    %c0_i32 = arith.constant 0 : i32
    %c0_i32_0 = arith.constant 0 : i32
    return %arg0, %c0_i32 : i32, i32
  }
  func.func @transform_1(%arg0: i32) -> (i32, i32) {
    %c0_i32 = arith.constant 0 : i32
    %c0_i32_0 = arith.constant 0 : i32
    %c0_i32_1 = arith.constant 0 : i32
    return %c0_i32, %c0_i32_0 : i32, i32
  }
  func.func @transform_2(%arg0: i32) -> (i32, i32, i32) {
    %c0_i32 = arith.constant 0 : i32
    %c0_i32_0 = arith.constant 0 : i32
    %c0_i32_1 = arith.constant 0 : i32
    %c0_i32_2 = arith.constant 0 : i32
    return %c0_i32, %c0_i32_0, %c0_i32_1 : i32, i32, i32
  }
  func.func @transform_3(%arg0: i32) -> (i32, i32) {
    %c0_i32 = arith.constant 0 : i32
    %c0_i32_0 = arith.constant 0 : i32
    return %arg0, %c0_i32 : i32, i32
  }
}

</mosaic_0001>

<llo_original>
// kernel: tpu_custom_call.1
$region0: #{tpu_custom_call.1}
  #allocation0 [shape = 'u32[]', space=smem, size = 0x4, offset = 0x4, fixed_abs, tag = 'smem constant byte address 0x4 - core index']
  #allocation1 [shape = 'u32[144,128]{1,0:T(1,128)}', space=vmem, size = 0x12000, scoped, tag = 'internal scratch']
  %s0 = inlined_call_operand.vmem [shape: f32[64,64], index: 0, kind: input, shape index: {}]
  %s1 = inlined_call_operand.hbm [shape: f32[64,256], index: 1, kind: input, shape index: {}]
  %s2 = inlined_call_operand.vmem [shape: f32[4,16,8], index: 2, kind: input, shape index: {}]
  %s3 = inlined_call_operand.hbm [shape: f32[128,256], index: 3, kind: output, shape index: {}]
  %s4 = sld [smem:[#allocation0]]
  $region49: #{tpu_custom_call.1} parent=0
    _
  %s6 = ssub.s32 1, %s4
  %s7 = scalar_select 0, %s6, %s4
  $region1: #{tpu_custom_call.1} parent=0
    #allocation2 [shape = 'u8[65536]{0}', space=vmem, size = 0x10000, scoped, tag = 'input window, operand 1, single buffered']
    #allocation3 [shape = 's32[2]{0}', space=sflag, size = 0x8, scoped, tag = 'scoped memory for tpu_custom_call.1']
    #allocation4 [shape = 's32[2]{0}', space=sflag, size = 0x8, scoped, tag = 'scoped memory for tpu_custom_call.1']
    #allocation5 [shape = 'u8[131072]{0}', space=vmem, size = 0x20000, scoped, tag = 'output window, operand 0']
    %8 = vsyncpa [#allocation3], 0
    %9 = vsyncpa [#allocation4], 0
    %s10 = scalar_lea.sflag [#allocation4], 1
    %11 = vsyncpa %s10, 0
    loop: start=0, step=1, limit=4
    $region2: #{tpu_custom_call.1} parent=1 // loop_pre_header
      _
    $region3: #{tpu_custom_call.1} parent=1 // loop_header
      %s13 = sphi 0, %s17
      %p14 = scmp.ge.s32.totalorder %s13, 4
      %s23 = sphi 0, %s25
      %s26 = sphi 0, %s23
      %s27 = sphi 0, %s26
      %s43 = sphi 0, %s27
      %s47 = sphi 0, %s47
      %s49 = sphi 0, %s47
      %s50 = sphi 0, %s49
      %s64 = sphi 0, %s50
      %s68 = sphi 0, %s68
      %s70 = sphi 0, %s68
      %s71 = sphi 0, %s70
      %s85 = sphi 0, %s71
      %s91 = sphi 0, %s93
      %s94 = sphi 0, %s91
      %s95 = sphi 0, %s94
      %s111 = sphi 0, %s95
    $region4: #{tpu_custom_call.1} parent=1 // loop_header_branch
      %16 = sbr.rel (%p14) target = $region8
    $region5: #{tpu_custom_call.1} parent=1 // loop_body
      %s18 = ssub.s32 %s13, 1
      %s19 = ssub.s32 %s13, 2
      %s20 = sadd.s32 %s13, 1
      %s21 = ssub.s32 %s13, %s20
      %p22 = scmp.eq.s32.totalorder %s21, 0
      %s24 = sadd.s32 %s23, 1
      %s25 = scalar_select %p22, %s23, %s24
      %p28 = pneg %p22
      %p29 = scmp.eq.s32.totalorder %s13, 1
      %p30 = por %p28, %p29
      %p31 = scmp.ne.s32.totalorder %s23, %s26
      %p32 = scmp.eq.s32.totalorder %s13, 0
      %p33 = por %p31, %p32
      %p34 = scmp.ne.s32.totalorder %s23, %s26
      %p35 = scmp.eq.s32.totalorder %s18, 1
      %p36 = por %p34, %p35
      %p37 = scmp.ne.s32.totalorder %s26, %s27
      %p38 = scmp.eq.s32.totalorder %s18, 0
      %p39 = por %p37, %p38
      %p40 = scmp.ne.s32.totalorder %s26, %s27
      %p41 = scmp.eq.s32.totalorder %s19, 1
      %p42 = por %p40, %p41
      %p44 = scmp.ne.s32.totalorder %s27, %s43
      %p45 = scmp.eq.s32.totalorder %s19, 0
      %p46 = por %p44, %p45
      %s48 = sadd.s32 %s47, 1
      %p51 = scmp.eq.s32.totalorder %s13, 1
      %p52 = scmp.ne.s32.totalorder %s47, %s49
      %p53 = scmp.eq.s32.totalorder %s13, 0
      %p54 = por %p52, %p53
      %p55 = scmp.ne.s32.totalorder %s47, %s49
      %p56 = scmp.eq.s32.totalorder %s18, 1
      %p57 = por %p55, %p56
      %p58 = scmp.ne.s32.totalorder %s49, %s50
      %p59 = scmp.eq.s32.totalorder %s18, 0
      %p60 = por %p58, %p59
      %p61 = scmp.ne.s32.totalorder %s49, %s50
      %p62 = scmp.eq.s32.totalorder %s19, 1
      %p63 = por %p61, %p62
      %p65 = scmp.ne.s32.totalorder %s50, %s64
      %p66 = scmp.eq.s32.totalorder %s19, 0
      %p67 = por %p65, %p66
      %s69 = sadd.s32 %s68, 1
      %p72 = scmp.eq.s32.totalorder %s13, 1
      %p73 = scmp.ne.s32.totalorder %s68, %s70
      %p74 = scmp.eq.s32.totalorder %s13, 0
      %p75 = por %p73, %p74
      %p76 = scmp.ne.s32.totalorder %s68, %s70
      %p77 = scmp.eq.s32.totalorder %s18, 1
      %p78 = por %p76, %p77
      %p79 = scmp.ne.s32.totalorder %s70, %s71
      %p80 = scmp.eq.s32.totalorder %s18, 0
      %p81 = por %p79, %p80
      %p82 = scmp.ne.s32.totalorder %s70, %s71
      %p83 = scmp.eq.s32.totalorder %s19, 1
      %p84 = por %p82, %p83
      %p86 = scmp.ne.s32.totalorder %s71, %s85
      %p87 = scmp.eq.s32.totalorder %s19, 0
      %p88 = por %p86, %p87
      %s89 = ssub.s32 %s13, %s20
      %p90 = scmp.eq.s32.totalorder %s89, 0
      %s92 = sadd.s32 %s91, 1
      %s93 = scalar_select %p90, %s91, %s92
      %p96 = pneg %p90
      %p97 = scmp.eq.s32.totalorder %s13, 1
      %p98 = por %p96, %p97
      %p99 = scmp.ne.s32.totalorder %s91, %s94
      %p100 = scmp.eq.s32.totalorder %s13, 0
      %p101 = por %p99, %p100
      %p102 = scmp.ne.s32.totalorder %s91, %s94
      %p103 = scmp.eq.s32.totalorder %s18, 1
      %p104 = por %p102, %p103
      %p105 = scmp.ne.s32.totalorder %s94, %s95
      %p106 = scmp.eq.s32.totalorder %s18, 0
      %p107 = por %p105, %p106
      %p108 = scmp.ne.s32.totalorder %s94, %s95
      %p109 = scmp.eq.s32.totalorder %s19, 1
      %p110 = por %p108, %p109
      %p112 = scmp.ne.s32.totalorder %s95, %s111
      %p113 = scmp.eq.s32.totalorder %s19, 0
      %p114 = por %p112, %p113
      %p115 = scmp.le.s32.totalorder 1, %s13
      %p116 = scmp.lt.s32.totalorder %s13, 3
      %p117 = pnand %p115, %p116
      %p118 = pneg %p117
      // Predicated region
      $region9: #{tpu_custom_call.1} parent=5 // pred_check
        _
      $region10: #{tpu_custom_call.1} parent=5 // pred_check_branch
        %120 = sbr.rel (%p117) target = $region12
      $region11: #{tpu_custom_call.1} parent=5 // pred_region
        %s121 = ssub.s32 %s13, 1
        // Predicated region
        $region13: #{tpu_custom_call.1} parent=11 // pred_check
          %p122 = pneg %p60
        $region14: #{tpu_custom_call.1} parent=11 // pred_check_branch
          %124 = sbr.rel (%p122) target = $region16
        $region15: #{tpu_custom_call.1} parent=11 // pred_region
          %s126 = ssub.s32 2048, 2048
          %127 = vsyncadd [#allocation3], %s126
          %s128 = sshll.u32 [#allocation2], 4
          %s129 = int_to_ptr.vmem [resolvable:$true] %s128
          %134 = dma.hbm_to_vmem [thread:$0]  %s1, 2048, %s129, [#allocation3], 256, 256, 16
        $region16: #{tpu_custom_call.1} parent=11 // pred_fallthru
          _
        // Predicated region
        $region17: #{tpu_custom_call.1} parent=11 // pred_check
          %p135 = pneg %p81
        $region18: #{tpu_custom_call.1} parent=11 // pred_check_branch
          %137 = sbr.rel (%p135) target = $region20
        $region19: #{tpu_custom_call.1} parent=11 // pred_region
          _
        $region20: #{tpu_custom_call.1} parent=11 // pred_fallthru
          _
      $region12: #{tpu_custom_call.1} parent=5 // pred_fallthru
        _
      %p138 = scmp.lt.s32.totalorder %s13, 2
      // Predicated region
      $region21: #{tpu_custom_call.1} parent=5 // pred_check
        %p139 = pneg %p138
      $region22: #{tpu_custom_call.1} parent=5 // pred_check_branch
        %141 = sbr.rel (%p139) target = $region24
      $region23: #{tpu_custom_call.1} parent=5 // pred_region
        // Predicated region
        $region25: #{tpu_custom_call.1} parent=23 // pred_check
          %p142 = pneg %p33
        $region26: #{tpu_custom_call.1} parent=23 // pred_check_branch
          %144 = sbr.rel (%p142) target = $region28
        $region27: #{tpu_custom_call.1} parent=23 // pred_region
          %s145 = smul.u32 4, %s13
          %p146 = scmp.lt.s32.totalorder %s145, 7
          %s147 = scalar_select %p146, %s145, 7
          %s148 = smul.addr %s147, 8
          %s149 = scalar_lea.vmem %s0, %s148
          %s150 = smul.u32 4, %s13
        $region28: #{tpu_custom_call.1} parent=23 // pred_fallthru
          _
      $region24: #{tpu_custom_call.1} parent=5 // pred_fallthru
        _
      %p151 = scmp.le.s32.totalorder 1, %s13
      %p152 = scmp.lt.s32.totalorder %s13, 3
      %p153 = pnand %p151, %p152
      %p154 = pneg %p153
      // Predicated region
      $region29: #{tpu_custom_call.1} parent=5 // pred_check
        _
      $region30: #{tpu_custom_call.1} parent=5 // pred_check_branch
        %156 = sbr.rel (%p153) target = $region32
      $region31: #{tpu_custom_call.1} parent=5 // pred_region
        %s157 = ssub.s32 %s13, 1
        // Predicated region
        $region33: #{tpu_custom_call.1} parent=31 // pred_check
          %p158 = pneg %p60
        $region34: #{tpu_custom_call.1} parent=31 // pred_check_branch
          %160 = sbr.rel (%p158) target = $region36
        $region35: #{tpu_custom_call.1} parent=31 // pred_region
          %161 = dma.done [#allocation3], 2048
        $region36: #{tpu_custom_call.1} parent=31 // pred_fallthru
          _
        %s162 = smul.u32 4, %s18
        %p163 = scmp.lt.s32.totalorder %s162, 7
        %s164 = scalar_select %p163, %s162, 7
        %s165 = smul.addr %s164, 8
        %s166 = scalar_lea.vmem %s0, %s165
        %p167 = pneg %p39
        %p168 = pneg %p36
        %p169 = pneg %p60
        %p170 = pneg %p57
        %p171 = pneg %p81
        %p172 = pneg %p78
        %p173 = pneg %p107
        %p174 = pneg %p104
        %s175 = sand.u32 %s94, 1
        %s176 = scalar_lea.sflag [#allocation4], %s175
        %s177 = sand.u32 %s94, 1
        %s178 = smul.addr %s177, 128
        %s179 = scalar_lea.vmem [#allocation5], %s178
        %s180 = smul.u32 4, %s18
        %p181 = scmp.lt.s32.totalorder %s180, 7
        %s182 = scalar_select %p181, %s180, 7
        %s183 = smul.addr %s182, 8
        %s184 = scalar_lea.vmem %s0, %s183
        %s185 = smul.u32 4, %s18
        %s186 = smul.u32 8, %s18
        %v187 = vld [vmem:[%s184] sm:$0xff]
        %v188 = vld [vmem:[%s184 + $0x8] sm:$0xff]
        %v189 = vld [vmem:[%s184 + $0x10] sm:$0xff]
        %v190 = vld [vmem:[%s184 + $0x18] sm:$0xff]
        %v191 = vld [vmem:[#allocation2] sm:$0xff]
        %v192 = vld [vmem:[#allocation2 + $0x8] sm:$0xff]
        %v193 = vld [vmem:[#allocation2 + $0x10] sm:$0xff]
        %v194 = vld [vmem:[#allocation2 + $0x18] sm:$0xff]
        %v195 = vld [vmem:[#allocation2 + $0x20] sm:$0xff]
        %v196 = vld [vmem:[#allocation2 + $0x28] sm:$0xff]
        %v197 = vld [vmem:[#allocation2 + $0x30] sm:$0xff]
        %v198 = vld [vmem:[#allocation2 + $0x38] sm:$0xff]
        %v199 = vld [vmem:[#allocation2 + $0x40] sm:$0xff]
        %v200 = vld [vmem:[#allocation2 + $0x48] sm:$0xff]
        %v201 = vld [vmem:[#allocation2 + $0x50] sm:$0xff]
        %v202 = vld [vmem:[#allocation2 + $0x58] sm:$0xff]
        %v203 = vld [vmem:[#allocation2 + $0x60] sm:$0xff]
        %v204 = vld [vmem:[#allocation2 + $0x68] sm:$0xff]
        %v205 = vld [vmem:[#allocation2 + $0x70] sm:$0xff]
        %v206 = vld [vmem:[#allocation2 + $0x78] sm:$0xff]
        %vm207 = vcmask 523264
        %v209 = vsel %vm207, %v187, 0
        %v212 = vsel %vm207, %v188, 0
        %v215 = vsel %vm207, %v189, 0
        %v218 = vsel %vm207, %v190, 0
        %220 = vmatprep.subr.mxu0 0.0
        %221 = vmatpush1.msra.mxu0 0.0
        %222 = vmatprep.subr.mxu0 0.0
        %223 = vmatpush1.msra.mxu0 0.0
        %224 = vmatprep.subr.mxu0 0.0
        %225 = vmatpush1.msra.mxu0 0.0
        %226 = vmatprep.subr.mxu0 0.0
        %227 = vmatpush1.msra.mxu0 0.0
        %228 = vmatprep.subr.mxu0 0.0
        %229 = vmatpush1.msra.mxu0 0.0
        %230 = vmatprep.subr.mxu0 0.0
        %231 = vmatpush1.msra.mxu0 0.0
        %232 = vmatprep.subr.mxu0 0.0
        %233 = vmatpush1.msra.mxu0 0.0
        %234 = vmatprep.subr.mxu0 0.0
        %235 = vmatpush1.msra.mxu0 0.0
        %236 = vmatprep.subr.mxu0 %v206
        %237 = vmatpush1.msra.mxu0 %v205
        %238 = vmatprep.subr.mxu0 %v204
        %239 = vmatpush1.msra.mxu0 %v203
        %240 = vmatprep.subr.mxu0 %v202
        %241 = vmatpush1.msra.mxu0 %v201
        %242 = vmatprep.subr.mxu0 %v200
        %243 = vmatpush1.msra.mxu0 %v199
        %244 = vmatprep.subr.mxu0 %v198
        %245 = vmatpush1.msra.mxu0 %v197
        %246 = vmatprep.subr.mxu0 %v196
        %247 = vmatpush1.msra.mxu0 %v195
        %248 = vmatprep.subr.mxu0 %v194
        %249 = vmatpush1.msra.mxu0 %v193
        %250 = vmatprep.subr.mxu0 %v192
        %251 = vmatpush1.msra.mxu0 %v191
        %252 = vmatprep.subr.mxu0 0.0
        %253 = vmatpush2.msra.mxu0 0.0
        %254 = vmatprep.subr.mxu0 0.0
        %255 = vmatpush2.msra.mxu0 0.0
        %256 = vmatprep.subr.mxu0 0.0
        %257 = vmatpush2.msra.mxu0 0.0
        %258 = vmatprep.subr.mxu0 0.0
        %259 = vmatpush2.msra.mxu0 0.0
        %260 = vmatprep.subr.mxu0 0.0
        %261 = vmatpush2.msra.mxu0 0.0
        %262 = vmatprep.subr.mxu0 0.0
        %263 = vmatpush2.msra.mxu0 0.0
        %264 = vmatprep.subr.mxu0 0.0
        %265 = vmatpush2.msra.mxu0 0.0
        %266 = vmatprep.subr.mxu0 0.0
        %267 = vmatpush2.msra.mxu0 0.0
        %268 = vmatprep.subr.mxu0 0.0
        %269 = vmatpush2.msra.mxu0 0.0
        %270 = vmatprep.subr.mxu0 0.0
        %271 = vmatpush2.msra.mxu0 0.0
        %272 = vmatprep.subr.mxu0 0.0
        %273 = vmatpush2.msra.mxu0 0.0
        %274 = vmatprep.subr.mxu0 0.0
        %275 = vmatpush2.msra.mxu0 0.0
        %276 = vmatprep.subr.mxu0 0.0
        %277 = vmatpush2.msra.mxu0 0.0
        %278 = vmatprep.subr.mxu0 0.0
        %279 = vmatpush2.msra.mxu0 0.0
        %280 = vmatprep.subr.mxu0 0.0
        %281 = vmatpush2.msra.mxu0 0.0
        %282 = vmatprep.subr.mxu0 0.0
        %283 = vmatpush2.msra.mxu0 0.0
        %284 = vmatprep.mubr.f32.mxu0 0.0
        %285 = vmatmul.mubr.f32.gmra.mxu0 %v209
        %v286 = vpop.f32.mrf.mxu0
        %v287 = vadd.f32 0.0, %v286
        %v288 = vpop.f32.mrf.mxu0
        %v289 = vadd.f32 0.0, %v288
        %290 = vmatprep.mubr.f32.mxu0 0.0
        %291 = vmatmul.mubr.f32.gmra.mxu0 %v212
        %v292 = vpop.f32.mrf.mxu0
        %v293 = vadd.f32 0.0, %v292
        %v294 = vpop.f32.mrf.mxu0
        %v295 = vadd.f32 0.0, %v294
        %296 = vmatprep.mubr.f32.mxu0 0.0
        %297 = vmatmul.mubr.f32.gmra.mxu0 %v215
        %v298 = vpop.f32.mrf.mxu0
        %v299 = vadd.f32 0.0, %v298
        %v300 = vpop.f32.mrf.mxu0
        %v301 = vadd.f32 0.0, %v300
        %302 = vmatprep.mubr.f32.mxu0 0.0
        %303 = vmatmul.mubr.f32.gmra.mxu0 %v218
        %v304 = vpop.f32.mrf.mxu0
        %v305 = vadd.f32 0.0, %v304
        %v306 = vpop.f32.mrf.mxu0
        %v307 = vadd.f32 0.0, %v306
        %308 = vdwg.mxu0
        %v309 = vld [vmem:[%s2] sm:$0xff]
        %v310 = vld [vmem:[%s2 + $0x8] sm:$0xff]
        %v311 = vld [vmem:[%s2 + $0x10] sm:$0xff]
        %v312 = vld [vmem:[%s2 + $0x18] sm:$0xff]
        %v313 = vld [vmem:[%s2 + $0x20] sm:$0xff]
        %v314 = vld [vmem:[%s2 + $0x28] sm:$0xff]
        %v315 = vld [vmem:[%s2 + $0x30] sm:$0xff]
        %v316 = vld [vmem:[%s2 + $0x38] sm:$0xff]
        %vm317 = vcmask 64512
        %v319 = vsel %vm317, %v309, 0
        %v322 = vsel %vm317, %v310, 0
        %324 = vmatprep.subr.mxu0 0.0
        %325 = vmatpush1.msra.mxu0 0.0
        %326 = vmatprep.subr.mxu0 0.0
        %327 = vmatpush1.msra.mxu0 0.0
        %328 = vmatprep.subr.mxu0 0.0
        %329 = vmatpush1.msra.mxu0 0.0
        %330 = vmatprep.subr.mxu0 0.0
        %331 = vmatpush1.msra.mxu0 0.0
        %332 = vmatprep.subr.mxu0 0.0
        %333 = vmatpush1.msra.mxu0 0.0
        %334 = vmatprep.subr.mxu0 0.0
        %335 = vmatpush1.msra.mxu0 0.0
        %336 = vmatprep.subr.mxu0 0.0
        %337 = vmatpush1.msra.mxu0 0.0
        %338 = vmatprep.subr.mxu0 0.0
        %339 = vmatpush1.msra.mxu0 0.0
        %340 = vmatprep.subr.mxu0 0.0
        %341 = vmatpush1.msra.mxu0 0.0
        %342 = vmatprep.subr.mxu0 0.0
        %343 = vmatpush1.msra.mxu0 0.0
        %344 = vmatprep.subr.mxu0 0.0
        %345 = vmatpush1.msra.mxu0 0.0
        %346 = vmatprep.subr.mxu0 0.0
        %347 = vmatpush1.msra.mxu0 0.0
        %348 = vmatprep.subr.mxu0 0.0
        %349 = vmatpush1.msra.mxu0 0.0
        %350 = vmatprep.subr.mxu0 0.0
        %351 = vmatpush1.msra.mxu0 0.0
        %352 = vmatprep.subr.mxu0 0.0
        %353 = vmatpush1.msra.mxu0 0.0
        %354 = vmatprep.subr.mxu0 %v289
        %355 = vmatpush1.msra.mxu0 %v287
        %356 = vmatprep.subr.mxu0 0.0
        %357 = vmatpush2.msra.mxu0 0.0
        %358 = vmatprep.subr.mxu0 0.0
        %359 = vmatpush2.msra.mxu0 0.0
        %360 = vmatprep.subr.mxu0 0.0
        %361 = vmatpush2.msra.mxu0 0.0
        %362 = vmatprep.subr.mxu0 0.0
        %363 = vmatpush2.msra.mxu0 0.0
        %364 = vmatprep.subr.mxu0 0.0
        %365 = vmatpush2.msra.mxu0 0.0
        %366 = vmatprep.subr.mxu0 0.0
        %367 = vmatpush2.msra.mxu0 0.0
        %368 = vmatprep.subr.mxu0 0.0
        %369 = vmatpush2.msra.mxu0 0.0
        %370 = vmatprep.subr.mxu0 0.0
        %371 = vmatpush2.msra.mxu0 0.0
        %372 = vmatprep.subr.mxu0 0.0
        %373 = vmatpush2.msra.mxu0 0.0
        %374 = vmatprep.subr.mxu0 0.0
        %375 = vmatpush2.msra.mxu0 0.0
        %376 = vmatprep.subr.mxu0 0.0
        %377 = vmatpush2.msra.mxu0 0.0
        %378 = vmatprep.subr.mxu0 0.0
        %379 = vmatpush2.msra.mxu0 0.0
        %380 = vmatprep.subr.mxu0 0.0
        %381 = vmatpush2.msra.mxu0 0.0
        %382 = vmatprep.subr.mxu0 0.0
        %383 = vmatpush2.msra.mxu0 0.0
        %384 = vmatprep.subr.mxu0 0.0
        %385 = vmatpush2.msra.mxu0 0.0
        %386 = vmatprep.subr.mxu0 0.0
        %387 = vmatpush2.msra.mxu0 0.0
        %388 = vmatprep.mubr.f32.mxu0 0.0
        %389 = vmatmul.mubr.f32.gmra.mxu0 %v319
        %v390 = vpop.f32.mrf.mxu0
        %v391 = vadd.f32 0.0, %v390
        %v392 = vpop.f32.mrf.mxu0
        %v393 = vadd.f32 0.0, %v392
        %394 = vmatprep.mubr.f32.mxu0 0.0
        %395 = vmatmul.mubr.f32.gmra.mxu0 %v322
        %v396 = vpop.f32.mrf.mxu0
        %v397 = vadd.f32 0.0, %v396
        %v398 = vpop.f32.mrf.mxu0
        %v399 = vadd.f32 0.0, %v398
        %400 = vdwg.mxu0
        %v402 = vsel %vm317, %v311, 0
        %v405 = vsel %vm317, %v312, 0
        %407 = vmatprep.subr.mxu0 0.0
        %408 = vmatpush1.msra.mxu0 0.0
        %409 = vmatprep.subr.mxu0 0.0
        %410 = vmatpush1.msra.mxu0 0.0
        %411 = vmatprep.subr.mxu0 0.0
        %412 = vmatpush1.msra.mxu0 0.0
        %413 = vmatprep.subr.mxu0 0.0
        %414 = vmatpush1.msra.mxu0 0.0
        %415 = vmatprep.subr.mxu0 0.0
        %416 = vmatpush1.msra.mxu0 0.0
        %417 = vmatprep.subr.mxu0 0.0
        %418 = vmatpush1.msra.mxu0 0.0
        %419 = vmatprep.subr.mxu0 0.0
        %420 = vmatpush1.msra.mxu0 0.0
        %421 = vmatprep.subr.mxu0 0.0
        %422 = vmatpush1.msra.mxu0 0.0
        %423 = vmatprep.subr.mxu0 0.0
        %424 = vmatpush1.msra.mxu0 0.0
        %425 = vmatprep.subr.mxu0 0.0
        %426 = vmatpush1.msra.mxu0 0.0
        %427 = vmatprep.subr.mxu0 0.0
        %428 = vmatpush1.msra.mxu0 0.0
        %429 = vmatprep.subr.mxu0 0.0
        %430 = vmatpush1.msra.mxu0 0.0
        %431 = vmatprep.subr.mxu0 0.0
        %432 = vmatpush1.msra.mxu0 0.0
        %433 = vmatprep.subr.mxu0 0.0
        %434 = vmatpush1.msra.mxu0 0.0
        %435 = vmatprep.subr.mxu0 0.0
        %436 = vmatpush1.msra.mxu0 0.0
        %437 = vmatprep.subr.mxu0 %v295
        %438 = vmatpush1.msra.mxu0 %v293
        %439 = vmatprep.subr.mxu0 0.0
        %440 = vmatpush2.msra.mxu0 0.0
        %441 = vmatprep.subr.mxu0 0.0
        %442 = vmatpush2.msra.mxu0 0.0
        %443 = vmatprep.subr.mxu0 0.0
        %444 = vmatpush2.msra.mxu0 0.0
        %445 = vmatprep.subr.mxu0 0.0
        %446 = vmatpush2.msra.mxu0 0.0
        %447 = vmatprep.subr.mxu0 0.0
        %448 = vmatpush2.msra.mxu0 0.0
        %449 = vmatprep.subr.mxu0 0.0
        %450 = vmatpush2.msra.mxu0 0.0
        %451 = vmatprep.subr.mxu0 0.0
        %452 = vmatpush2.msra.mxu0 0.0
        %453 = vmatprep.subr.mxu0 0.0
        %454 = vmatpush2.msra.mxu0 0.0
        %455 = vmatprep.subr.mxu0 0.0
        %456 = vmatpush2.msra.mxu0 0.0
        %457 = vmatprep.subr.mxu0 0.0
        %458 = vmatpush2.msra.mxu0 0.0
        %459 = vmatprep.subr.mxu0 0.0
        %460 = vmatpush2.msra.mxu0 0.0
        %461 = vmatprep.subr.mxu0 0.0
        %462 = vmatpush2.msra.mxu0 0.0
        %463 = vmatprep.subr.mxu0 0.0
        %464 = vmatpush2.msra.mxu0 0.0
        %465 = vmatprep.subr.mxu0 0.0
        %466 = vmatpush2.msra.mxu0 0.0
        %467 = vmatprep.subr.mxu0 0.0
        %468 = vmatpush2.msra.mxu0 0.0
        %469 = vmatprep.subr.mxu0 0.0
        %470 = vmatpush2.msra.mxu0 0.0
        %471 = vmatprep.mubr.f32.mxu0 0.0
        %472 = vmatmul.mubr.f32.gmra.mxu0 %v402
        %v473 = vpop.f32.mrf.mxu0
        %v474 = vadd.f32 0.0, %v473
        %v475 = vpop.f32.mrf.mxu0
        %v476 = vadd.f32 0.0, %v475
        %477 = vmatprep.mubr.f32.mxu0 0.0
        %478 = vmatmul.mubr.f32.gmra.mxu0 %v405
        %v479 = vpop.f32.mrf.mxu0
        %v480 = vadd.f32 0.0, %v479
        %v481 = vpop.f32.mrf.mxu0
        %v482 = vadd.f32 0.0, %v481
        %483 = vdwg.mxu0
        %v485 = vsel %vm317, %v313, 0
        %v488 = vsel %vm317, %v314, 0
        %490 = vmatprep.subr.mxu0 0.0
        %491 = vmatpush1.msra.mxu0 0.0
        %492 = vmatprep.subr.mxu0 0.0
        %493 = vmatpush1.msra.mxu0 0.0
        %494 = vmatprep.subr.mxu0 0.0
        %495 = vmatpush1.msra.mxu0 0.0
        %496 = vmatprep.subr.mxu0 0.0
        %497 = vmatpush1.msra.mxu0 0.0
        %498 = vmatprep.subr.mxu0 0.0
        %499 = vmatpush1.msra.mxu0 0.0
        %500 = vmatprep.subr.mxu0 0.0
        %501 = vmatpush1.msra.mxu0 0.0
        %502 = vmatprep.subr.mxu0 0.0
        %503 = vmatpush1.msra.mxu0 0.0
        %504 = vmatprep.subr.mxu0 0.0
        %505 = vmatpush1.msra.mxu0 0.0
        %506 = vmatprep.subr.mxu0 0.0
        %507 = vmatpush1.msra.mxu0 0.0
        %508 = vmatprep.subr.mxu0 0.0
        %509 = vmatpush1.msra.mxu0 0.0
        %510 = vmatprep.subr.mxu0 0.0
        %511 = vmatpush1.msra.mxu0 0.0
        %512 = vmatprep.subr.mxu0 0.0
        %513 = vmatpush1.msra.mxu0 0.0
        %514 = vmatprep.subr.mxu0 0.0
        %515 = vmatpush1.msra.mxu0 0.0
        %516 = vmatprep.subr.mxu0 0.0
        %517 = vmatpush1.msra.mxu0 0.0
        %518 = vmatprep.subr.mxu0 0.0
        %519 = vmatpush1.msra.mxu0 0.0
        %520 = vmatprep.subr.mxu0 %v301
        %521 = vmatpush1.msra.mxu0 %v299
        %522 = vmatprep.subr.mxu0 0.0
        %523 = vmatpush2.msra.mxu0 0.0
        %524 = vmatprep.subr.mxu0 0.0
        %525 = vmatpush2.msra.mxu0 0.0
        %526 = vmatprep.subr.mxu0 0.0
        %527 = vmatpush2.msra.mxu0 0.0
        %528 = vmatprep.subr.mxu0 0.0
        %529 = vmatpush2.msra.mxu0 0.0
        %530 = vmatprep.subr.mxu0 0.0
        %531 = vmatpush2.msra.mxu0 0.0
        %532 = vmatprep.subr.mxu0 0.0
        %533 = vmatpush2.msra.mxu0 0.0
        %534 = vmatprep.subr.mxu0 0.0
        %535 = vmatpush2.msra.mxu0 0.0
        %536 = vmatprep.subr.mxu0 0.0
        %537 = vmatpush2.msra.mxu0 0.0
        %538 = vmatprep.subr.mxu0 0.0
        %539 = vmatpush2.msra.mxu0 0.0
        %540 = vmatprep.subr.mxu0 0.0
        %541 = vmatpush2.msra.mxu0 0.0
        %542 = vmatprep.subr.mxu0 0.0
        %543 = vmatpush2.msra.mxu0 0.0
        %544 = vmatprep.subr.mxu0 0.0
        %545 = vmatpush2.msra.mxu0 0.0
        %546 = vmatprep.subr.mxu0 0.0
        %547 = vmatpush2.msra.mxu0 0.0
        %548 = vmatprep.subr.mxu0 0.0
        %549 = vmatpush2.msra.mxu0 0.0
        %550 = vmatprep.subr.mxu0 0.0
        %551 = vmatpush2.msra.mxu0 0.0
        %552 = vmatprep.subr.mxu0 0.0
        %553 = vmatpush2.msra.mxu0 0.0
        %554 = vmatprep.mubr.f32.mxu0 0.0
        %555 = vmatmul.mubr.f32.gmra.mxu0 %v485
        %v556 = vpop.f32.mrf.mxu0
        %v557 = vadd.f32 0.0, %v556
        %v558 = vpop.f32.mrf.mxu0
        %v559 = vadd.f32 0.0, %v558
        %560 = vmatprep.mubr.f32.mxu0 0.0
        %561 = vmatmul.mubr.f32.gmra.mxu0 %v488
        %v562 = vpop.f32.mrf.mxu0
        %v563 = vadd.f32 0.0, %v562
        %v564 = vpop.f32.mrf.mxu0
        %v565 = vadd.f32 0.0, %v564
        %566 = vdwg.mxu0
        %v568 = vsel %vm317, %v315, 0
        %v571 = vsel %vm317, %v316, 0
        %573 = vmatprep.subr.mxu0 0.0
        %574 = vmatpush1.msra.mxu0 0.0
        %575 = vmatprep.subr.mxu0 0.0
        %576 = vmatpush1.msra.mxu0 0.0
        %577 = vmatprep.subr.mxu0 0.0
        %578 = vmatpush1.msra.mxu0 0.0
        %579 = vmatprep.subr.mxu0 0.0
        %580 = vmatpush1.msra.mxu0 0.0
        %581 = vmatprep.subr.mxu0 0.0
        %582 = vmatpush1.msra.mxu0 0.0
        %583 = vmatprep.subr.mxu0 0.0
        %584 = vmatpush1.msra.mxu0 0.0
        %585 = vmatprep.subr.mxu0 0.0
        %586 = vmatpush1.msra.mxu0 0.0
        %587 = vmatprep.subr.mxu0 0.0
        %588 = vmatpush1.msra.mxu0 0.0
        %589 = vmatprep.subr.mxu0 0.0
        %590 = vmatpush1.msra.mxu0 0.0
        %591 = vmatprep.subr.mxu0 0.0
        %592 = vmatpush1.msra.mxu0 0.0
        %593 = vmatprep.subr.mxu0 0.0
        %594 = vmatpush1.msra.mxu0 0.0
        %595 = vmatprep.subr.mxu0 0.0
        %596 = vmatpush1.msra.mxu0 0.0
        %597 = vmatprep.subr.mxu0 0.0
        %598 = vmatpush1.msra.mxu0 0.0
        %599 = vmatprep.subr.mxu0 0.0
        %600 = vmatpush1.msra.mxu0 0.0
        %601 = vmatprep.subr.mxu0 0.0
        %602 = vmatpush1.msra.mxu0 0.0
        %603 = vmatprep.subr.mxu0 %v307
        %604 = vmatpush1.msra.mxu0 %v305
        %605 = vmatprep.subr.mxu0 0.0
        %606 = vmatpush2.msra.mxu0 0.0
        %607 = vmatprep.subr.mxu0 0.0
        %608 = vmatpush2.msra.mxu0 0.0
        %609 = vmatprep.subr.mxu0 0.0
        %610 = vmatpush2.msra.mxu0 0.0
        %611 = vmatprep.subr.mxu0 0.0
        %612 = vmatpush2.msra.mxu0 0.0
        %613 = vmatprep.subr.mxu0 0.0
        %614 = vmatpush2.msra.mxu0 0.0
        %615 = vmatprep.subr.mxu0 0.0
        %616 = vmatpush2.msra.mxu0 0.0
        %617 = vmatprep.subr.mxu0 0.0
        %618 = vmatpush2.msra.mxu0 0.0
        %619 = vmatprep.subr.mxu0 0.0
        %620 = vmatpush2.msra.mxu0 0.0
        %621 = vmatprep.subr.mxu0 0.0
        %622 = vmatpush2.msra.mxu0 0.0
        %623 = vmatprep.subr.mxu0 0.0
        %624 = vmatpush2.msra.mxu0 0.0
        %625 = vmatprep.subr.mxu0 0.0
        %626 = vmatpush2.msra.mxu0 0.0
        %627 = vmatprep.subr.mxu0 0.0
        %628 = vmatpush2.msra.mxu0 0.0
        %629 = vmatprep.subr.mxu0 0.0
        %630 = vmatpush2.msra.mxu0 0.0
        %631 = vmatprep.subr.mxu0 0.0
        %632 = vmatpush2.msra.mxu0 0.0
        %633 = vmatprep.subr.mxu0 0.0
        %634 = vmatpush2.msra.mxu0 0.0
        %635 = vmatprep.subr.mxu0 0.0
        %636 = vmatpush2.msra.mxu0 0.0
        %637 = vmatprep.mubr.f32.mxu0 0.0
        %638 = vmatmul.mubr.f32.gmra.mxu0 %v568
        %v639 = vpop.f32.mrf.mxu0
        %v640 = vadd.f32 0.0, %v639
        %v641 = vpop.f32.mrf.mxu0
        %v642 = vadd.f32 0.0, %v641
        %643 = vmatprep.mubr.f32.mxu0 0.0
        %644 = vmatmul.mubr.f32.gmra.mxu0 %v571
        %v645 = vpop.f32.mrf.mxu0
        %v646 = vadd.f32 0.0, %v645
        %v647 = vpop.f32.mrf.mxu0
        %v648 = vadd.f32 0.0, %v647
        %649 = vdwg.mxu0
        %650 = vst [vmem:[%s179] sm:$0xff] %v391
        %651 = vst [vmem:[%s179 + $0x8] sm:$0xff] %v393
        %652 = vst [vmem:[%s179 + $0x10] sm:$0xff] %v397
        %653 = vst [vmem:[%s179 + $0x18] sm:$0xff] %v399
        %654 = vst [vmem:[%s179 + $0x20] sm:$0xff] %v474
        %655 = vst [vmem:[%s179 + $0x28] sm:$0xff] %v476
        %656 = vst [vmem:[%s179 + $0x30] sm:$0xff] %v480
        %657 = vst [vmem:[%s179 + $0x38] sm:$0xff] %v482
        %658 = vst [vmem:[%s179 + $0x40] sm:$0xff] %v557
        %659 = vst [vmem:[%s179 + $0x48] sm:$0xff] %v559
        %660 = vst [vmem:[%s179 + $0x50] sm:$0xff] %v563
        %661 = vst [vmem:[%s179 + $0x58] sm:$0xff] %v565
        %662 = vst [vmem:[%s179 + $0x60] sm:$0xff] %v640
        %663 = vst [vmem:[%s179 + $0x68] sm:$0xff] %v642
        %664 = vst [vmem:[%s179 + $0x70] sm:$0xff] %v646
        %665 = vst [vmem:[%s179 + $0x78] sm:$0xff] %v648
        %s666 = sand.u32 %s94, 1
        %s667 = scalar_lea.sflag [#allocation4], %s666
        %s668 = sand.u32 %s94, 1
        %s669 = smul.addr %s668, 128
        %s670 = scalar_lea.vmem [#allocation5], %s669
        // Predicated region
        $region37: #{tpu_custom_call.1} parent=31 // pred_check
          %p671 = pneg %p104
        $region38: #{tpu_custom_call.1} parent=31 // pred_check_branch
          %673 = sbr.rel (%p671) target = $region40
        $region39: #{tpu_custom_call.1} parent=31 // pred_region
          %s674 = smul.u32 8, %s18
          %s676 = ssub.s32 2048, 2048
          %677 = vsyncadd %s667, %s676
          %s678 = smul.addr %s674, 2
          %s679 = smul.addr %s678, 128
          %s680 = scalar_lea.hbm %s3, %s679
          %s681 = sshll.u32 %s670, 4
          %s682 = int_to_ptr.vmem [resolvable:$true] %s681
          %687 = dma.vmem_to_hbm [thread:$0]  %s682, 2048, %s680, %s667, 256, 256, 16
        $region40: #{tpu_custom_call.1} parent=31 // pred_fallthru
          _
      $region32: #{tpu_custom_call.1} parent=5 // pred_fallthru
        _
      %p688 = scmp.le.s32.totalorder 2, %s13
      // Predicated region
      $region41: #{tpu_custom_call.1} parent=5 // pred_check
        %p689 = pneg %p688
      $region42: #{tpu_custom_call.1} parent=5 // pred_check_branch
        %691 = sbr.rel (%p689) target = $region44
      $region43: #{tpu_custom_call.1} parent=5 // pred_region
        %s692 = ssub.s32 %s13, 2
        // Predicated region
        $region45: #{tpu_custom_call.1} parent=43 // pred_check
          %p693 = pneg %p110
        $region46: #{tpu_custom_call.1} parent=43 // pred_check_branch
          %695 = sbr.rel (%p693) target = $region48
        $region47: #{tpu_custom_call.1} parent=43 // pred_region
          %s696 = sand.u32 %s95, 1
          %s697 = scalar_lea.sflag [#allocation4], %s696
          %s698 = sand.u32 %s95, 1
          %s699 = smul.addr %s698, 128
          %s700 = scalar_lea.vmem [#allocation5], %s699
          %701 = dma.done %s697, 2048
        $region48: #{tpu_custom_call.1} parent=43 // pred_fallthru
          _
      $region44: #{tpu_custom_call.1} parent=5 // pred_fallthru
        _
    $region6: #{tpu_custom_call.1} parent=1 // loop_footer
      %s17 = sadd.s32 1, %s13
    $region7: #{tpu_custom_call.1} parent=1 // loop_footer_branch
      %12 = sbr.rel target = $region3
    $region8: #{tpu_custom_call.1} parent=1 // loop_exit
      _
    %702 = vsyncpa [#allocation3], 1
    %s703 = scalar_lea.sflag [#allocation3], 1
    %704 = vsyncpa %s703, 1
    %705 = vsyncpa [#allocation4], 1
    %s706 = scalar_lea.sflag [#allocation4], 1
    %707 = vsyncpa %s706, 1

// kernel: tpu_custom_call.1
$region0: #{tpu_custom_call.1}
  #allocation0 [shape = 'u32[]', space=smem, size = 0x4, offset = 0x4, fixed_abs, tag = 'smem constant byte address 0x4 - core index']
  #allocation1 [shape = 'u32[144,128]{1,0:T(1,128)}', space=vmem, size = 0x12000, scoped, tag = 'internal scratch']
  %s0 = inlined_call_operand.vmem [shape: f32[64,64], index: 0, kind: input, shape index: {}]
  %s1 = inlined_call_operand.hbm [shape: f32[64,256], index: 1, kind: input, shape index: {}]
  %s2 = inlined_call_operand.vmem [shape: f32[4,16,8], index: 2, kind: input, shape index: {}]
  %s3 = inlined_call_operand.hbm [shape: f32[128,256], index: 3, kind: output, shape index: {}]
  %s4 = sld [smem:[#allocation0]]
  $region49: #{tpu_custom_call.1} parent=0
    _
  %s6 = ssub.s32 1, %s4
  %s7 = scalar_select 0, %s6, %s4
  $region1: #{tpu_custom_call.1} parent=0
    #allocation2 [shape = 'u8[65536]{0}', space=vmem, size = 0x10000, scoped, tag = 'input window, operand 1, single buffered']
    #allocation3 [shape = 's32[2]{0}', space=sflag, size = 0x8, scoped, tag = 'scoped memory for tpu_custom_call.1']
    #allocation4 [shape = 's32[2]{0}', space=sflag, size = 0x8, scoped, tag = 'scoped memory for tpu_custom_call.1']
    #allocation5 [shape = 'u8[131072]{0}', space=vmem, size = 0x20000, scoped, tag = 'output window, operand 0']
    %8 = vsyncpa [#allocation3], 0
    %9 = vsyncpa [#allocation4], 0
    %s10 = scalar_lea.sflag [#allocation4], 1
    %11 = vsyncpa %s10, 0
    loop: start=0, step=1, limit=4
    $region2: #{tpu_custom_call.1} parent=1 // loop_pre_header
      _
    $region3: #{tpu_custom_call.1} parent=1 // loop_header
      %s13 = sphi 0, %s17
      %p14 = scmp.ge.s32.totalorder %s13, 4
      %s23 = sphi 0, %s25
      %s26 = sphi 0, %s23
      %s27 = sphi 0, %s26
      %s43 = sphi 0, %s27
      %s47 = sphi 0, %s47
      %s49 = sphi 0, %s47
      %s50 = sphi 0, %s49
      %s64 = sphi 0, %s50
      %s68 = sphi 0, %s68
      %s70 = sphi 0, %s68
      %s71 = sphi 0, %s70
      %s85 = sphi 0, %s71
      %s91 = sphi 0, %s93
      %s94 = sphi 0, %s91
      %s95 = sphi 0, %s94
      %s111 = sphi 0, %s95
    $region4: #{tpu_custom_call.1} parent=1 // loop_header_branch
      %16 = sbr.rel (%p14) target = $region8
    $region5: #{tpu_custom_call.1} parent=1 // loop_body
      %s18 = ssub.s32 %s13, 1
      %s19 = ssub.s32 %s13, 2
      %s20 = sadd.s32 %s13, 1
      %s21 = ssub.s32 %s13, %s20
      %p22 = scmp.eq.s32.totalorder %s21, 0
      %s24 = sadd.s32 %s23, 1
      %s25 = scalar_select %p22, %s23, %s24
      %p28 = pneg %p22
      %p29 = scmp.eq.s32.totalorder %s13, 1
      %p30 = por %p28, %p29
      %p31 = scmp.ne.s32.totalorder %s23, %s26
      %p32 = scmp.eq.s32.totalorder %s13, 0
      %p33 = por %p31, %p32
      %p34 = scmp.ne.s32.totalorder %s23, %s26
      %p35 = scmp.eq.s32.totalorder %s18, 1
      %p36 = por %p34, %p35
      %p37 = scmp.ne.s32.totalorder %s26, %s27
      %p38 = scmp.eq.s32.totalorder %s18, 0
      %p39 = por %p37, %p38
      %p40 = scmp.ne.s32.totalorder %s26, %s27
      %p41 = scmp.eq.s32.totalorder %s19, 1
      %p42 = por %p40, %p41
      %p44 = scmp.ne.s32.totalorder %s27, %s43
      %p45 = scmp.eq.s32.totalorder %s19, 0
      %p46 = por %p44, %p45
      %s48 = sadd.s32 %s47, 1
      %p51 = scmp.eq.s32.totalorder %s13, 1
      %p52 = scmp.ne.s32.totalorder %s47, %s49
      %p53 = scmp.eq.s32.totalorder %s13, 0
      %p54 = por %p52, %p53
      %p55 = scmp.ne.s32.totalorder %s47, %s49
      %p56 = scmp.eq.s32.totalorder %s18, 1
      %p57 = por %p55, %p56
      %p58 = scmp.ne.s32.totalorder %s49, %s50
      %p59 = scmp.eq.s32.totalorder %s18, 0
      %p60 = por %p58, %p59
      %p61 = scmp.ne.s32.totalorder %s49, %s50
      %p62 = scmp.eq.s32.totalorder %s19, 1
      %p63 = por %p61, %p62
      %p65 = scmp.ne.s32.totalorder %s50, %s64
      %p66 = scmp.eq.s32.totalorder %s19, 0
      %p67 = por %p65, %p66
      %s69 = sadd.s32 %s68, 1
      %p72 = scmp.eq.s32.totalorder %s13, 1
      %p73 = scmp.ne.s32.totalorder %s68, %s70
      %p74 = scmp.eq.s32.totalorder %s13, 0
      %p75 = por %p73, %p74
      %p76 = scmp.ne.s32.totalorder %s68, %s70
      %p77 = scmp.eq.s32.totalorder %s18, 1
      %p78 = por %p76, %p77
      %p79 = scmp.ne.s32.totalorder %s70, %s71
      %p80 = scmp.eq.s32.totalorder %s18, 0
      %p81 = por %p79, %p80
      %p82 = scmp.ne.s32.totalorder %s70, %s71
      %p83 = scmp.eq.s32.totalorder %s19, 1
      %p84 = por %p82, %p83
      %p86 = scmp.ne.s32.totalorder %s71, %s85
      %p87 = scmp.eq.s32.totalorder %s19, 0
      %p88 = por %p86, %p87
      %s89 = ssub.s32 %s13, %s20
      %p90 = scmp.eq.s32.totalorder %s89, 0
      %s92 = sadd.s32 %s91, 1
      %s93 = scalar_select %p90, %s91, %s92
      %p96 = pneg %p90
      %p97 = scmp.eq.s32.totalorder %s13, 1
      %p98 = por %p96, %p97
      %p99 = scmp.ne.s32.totalorder %s91, %s94
      %p100 = scmp.eq.s32.totalorder %s13, 0
      %p101 = por %p99, %p100
      %p102 = scmp.ne.s32.totalorder %s91, %s94
      %p103 = scmp.eq.s32.totalorder %s18, 1
      %p104 = por %p102, %p103
      %p105 = scmp.ne.s32.totalorder %s94, %s95
      %p106 = scmp.eq.s32.totalorder %s18, 0
      %p107 = por %p105, %p106
      %p108 = scmp.ne.s32.totalorder %s94, %s95
      %p109 = scmp.eq.s32.totalorder %s19, 1
      %p110 = por %p108, %p109
      %p112 = scmp.ne.s32.totalorder %s95, %s111
      %p113 = scmp.eq.s32.totalorder %s19, 0
      %p114 = por %p112, %p113
      %p115 = scmp.le.s32.totalorder 1, %s13
      %p116 = scmp.lt.s32.totalorder %s13, 3
      %p117 = pnand %p115, %p116
      %p118 = pneg %p117
      // Predicated region
      $region9: #{tpu_custom_call.1} parent=5 // pred_check
        _
      $region10: #{tpu_custom_call.1} parent=5 // pred_check_branch
        %120 = sbr.rel (%p117) target = $region12
      $region11: #{tpu_custom_call.1} parent=5 // pred_region
        %s121 = ssub.s32 %s13, 1
        // Predicated region
        $region13: #{tpu_custom_call.1} parent=11 // pred_check
          %p122 = pneg %p60
        $region14: #{tpu_custom_call.1} parent=11 // pred_check_branch
          %124 = sbr.rel (%p122) target = $region16
        $region15: #{tpu_custom_call.1} parent=11 // pred_region
          %s126 = ssub.s32 2048, 2048
          %127 = vsyncadd [#allocation3], %s126
          %s128 = sshll.u32 [#allocation2], 4
          %s129 = int_to_ptr.vmem [resolvable:$true] %s128
          %134 = dma.hbm_to_vmem [thread:$0]  %s1, 2048, %s129, [#allocation3], 256, 256, 16
        $region16: #{tpu_custom_call.1} parent=11 // pred_fallthru
          _
        // Predicated region
        $region17: #{tpu_custom_call.1} parent=11 // pred_check
          %p135 = pneg %p81
        $region18: #{tpu_custom_call.1} parent=11 // pred_check_branch
          %137 = sbr.rel (%p135) target = $region20
        $region19: #{tpu_custom_call.1} parent=11 // pred_region
          _
        $region20: #{tpu_custom_call.1} parent=11 // pred_fallthru
          _
      $region12: #{tpu_custom_call.1} parent=5 // pred_fallthru
        _
      %p138 = scmp.lt.s32.totalorder %s13, 2
      // Predicated region
      $region21: #{tpu_custom_call.1} parent=5 // pred_check
        %p139 = pneg %p138
      $region22: #{tpu_custom_call.1} parent=5 // pred_check_branch
        %141 = sbr.rel (%p139) target = $region24
      $region23: #{tpu_custom_call.1} parent=5 // pred_region
        // Predicated region
        $region25: #{tpu_custom_call.1} parent=23 // pred_check
          %p142 = pneg %p33
        $region26: #{tpu_custom_call.1} parent=23 // pred_check_branch
          %144 = sbr.rel (%p142) target = $region28
        $region27: #{tpu_custom_call.1} parent=23 // pred_region
          %s145 = smul.u32 4, %s13
          %p146 = scmp.lt.s32.totalorder %s145, 7
          %s147 = scalar_select %p146, %s145, 7
          %s148 = smul.addr %s147, 8
          %s149 = scalar_lea.vmem %s0, %s148
          %s150 = smul.u32 4, %s13
        $region28: #{tpu_custom_call.1} parent=23 // pred_fallthru
          _
      $region24: #{tpu_custom_call.1} parent=5 // pred_fallthru
        _
      %p151 = scmp.le.s32.totalorder 1, %s13
      %p152 = scmp.lt.s32.totalorder %s13, 3
      %p153 = pnand %p151, %p152
      %p154 = pneg %p153
      // Predicated region
      $region29: #{tpu_custom_call.1} parent=5 // pred_check
        _
      $region30: #{tpu_custom_call.1} parent=5 // pred_check_branch
        %156 = sbr.rel (%p153) target = $region32
      $region31: #{tpu_custom_call.1} parent=5 // pred_region
        %s157 = ssub.s32 %s13, 1
        // Predicated region
        $region33: #{tpu_custom_call.1} parent=31 // pred_check
          %p158 = pneg %p60
        $region34: #{tpu_custom_call.1} parent=31 // pred_check_branch
          %160 = sbr.rel (%p158) target = $region36
        $region35: #{tpu_custom_call.1} parent=31 // pred_region
          %161 = dma.done [#allocation3], 2048
        $region36: #{tpu_custom_call.1} parent=31 // pred_fallthru
          _
        %s162 = smul.u32 4, %s18
        %p163 = scmp.lt.s32.totalorder %s162, 7
        %s164 = scalar_select %p163, %s162, 7
        %s165 = smul.addr %s164, 8
        %s166 = scalar_lea.vmem %s0, %s165
        %p167 = pneg %p39
        %p168 = pneg %p36
        %p169 = pneg %p60
        %p170 = pneg %p57
        %p171 = pneg %p81
        %p172 = pneg %p78
        %p173 = pneg %p107
        %p174 = pneg %p104
        %s175 = sand.u32 %s94, 1
        %s176 = scalar_lea.sflag [#allocation4], %s175
        %s177 = sand.u32 %s94, 1
        %s178 = smul.addr %s177, 128
        %s179 = scalar_lea.vmem [#allocation5], %s178
        %s180 = smul.u32 4, %s18
        %p181 = scmp.lt.s32.totalorder %s180, 7
        %s182 = scalar_select %p181, %s180, 7
        %s183 = smul.addr %s182, 8
        %s184 = scalar_lea.vmem %s0, %s183
        %s185 = smul.u32 4, %s18
        %s186 = smul.u32 8, %s18
        %v187 = vld [vmem:[%s184] sm:$0xff]
        %v188 = vld [vmem:[%s184 + $0x8] sm:$0xff]
        %v189 = vld [vmem:[%s184 + $0x10] sm:$0xff]
        %v190 = vld [vmem:[%s184 + $0x18] sm:$0xff]
        %v191 = vld [vmem:[#allocation2] sm:$0xff]
        %v192 = vld [vmem:[#allocation2 + $0x8] sm:$0xff]
        %v193 = vld [vmem:[#allocation2 + $0x10] sm:$0xff]
        %v194 = vld [vmem:[#allocation2 + $0x18] sm:$0xff]
        %v195 = vld [vmem:[#allocation2 + $0x20] sm:$0xff]
        %v196 = vld [vmem:[#allocation2 + $0x28] sm:$0xff]
        %v197 = vld [vmem:[#allocation2 + $0x30] sm:$0xff]
        %v198 = vld [vmem:[#allocation2 + $0x38] sm:$0xff]
        %v199 = vld [vmem:[#allocation2 + $0x40] sm:$0xff]
        %v200 = vld [vmem:[#allocation2 + $0x48] sm:$0xff]
        %v201 = vld [vmem:[#allocation2 + $0x50] sm:$0xff]
        %v202 = vld [vmem:[#allocation2 + $0x58] sm:$0xff]
        %v203 = vld [vmem:[#allocation2 + $0x60] sm:$0xff]
        %v204 = vld [vmem:[#allocation2 + $0x68] sm:$0xff]
        %v205 = vld [vmem:[#allocation2 + $0x70] sm:$0xff]
        %v206 = vld [vmem:[#allocation2 + $0x78] sm:$0xff]
        %vm207 = vcmask 523264
        %v209 = vsel %vm207, %v187, 0
        %v212 = vsel %vm207, %v188, 0
        %v215 = vsel %vm207, %v189, 0
        %v218 = vsel %vm207, %v190, 0
        %220 = vmatprep.subr.mxu0 0.0
        %221 = vmatpush1.msra.mxu0 0.0
        %222 = vmatprep.subr.mxu0 0.0
        %223 = vmatpush1.msra.mxu0 0.0
        %224 = vmatprep.subr.mxu0 0.0
        %225 = vmatpush1.msra.mxu0 0.0
        %226 = vmatprep.subr.mxu0 0.0
        %227 = vmatpush1.msra.mxu0 0.0
        %228 = vmatprep.subr.mxu0 0.0
        %229 = vmatpush1.msra.mxu0 0.0
        %230 = vmatprep.subr.mxu0 0.0
        %231 = vmatpush1.msra.mxu0 0.0
        %232 = vmatprep.subr.mxu0 0.0
        %233 = vmatpush1.msra.mxu0 0.0
        %234 = vmatprep.subr.mxu0 0.0
        %235 = vmatpush1.msra.mxu0 0.0
        %236 = vmatprep.subr.mxu0 %v206
        %237 = vmatpush1.msra.mxu0 %v205
        %238 = vmatprep.subr.mxu0 %v204
        %239 = vmatpush1.msra.mxu0 %v203
        %240 = vmatprep.subr.mxu0 %v202
        %241 = vmatpush1.msra.mxu0 %v201
        %242 = vmatprep.subr.mxu0 %v200
        %243 = vmatpush1.msra.mxu0 %v199
        %244 = vmatprep.subr.mxu0 %v198
        %245 = vmatpush1.msra.mxu0 %v197
        %246 = vmatprep.subr.mxu0 %v196
        %247 = vmatpush1.msra.mxu0 %v195
        %248 = vmatprep.subr.mxu0 %v194
        %249 = vmatpush1.msra.mxu0 %v193
        %250 = vmatprep.subr.mxu0 %v192
        %251 = vmatpush1.msra.mxu0 %v191
        %252 = vmatprep.subr.mxu0 0.0
        %253 = vmatpush2.msra.mxu0 0.0
        %254 = vmatprep.subr.mxu0 0.0
        %255 = vmatpush2.msra.mxu0 0.0
        %256 = vmatprep.subr.mxu0 0.0
        %257 = vmatpush2.msra.mxu0 0.0
        %258 = vmatprep.subr.mxu0 0.0
        %259 = vmatpush2.msra.mxu0 0.0
        %260 = vmatprep.subr.mxu0 0.0
        %261 = vmatpush2.msra.mxu0 0.0
        %262 = vmatprep.subr.mxu0 0.0
        %263 = vmatpush2.msra.mxu0 0.0
        %264 = vmatprep.subr.mxu0 0.0
        %265 = vmatpush2.msra.mxu0 0.0
        %266 = vmatprep.subr.mxu0 0.0
        %267 = vmatpush2.msra.mxu0 0.0
        %268 = vmatprep.subr.mxu0 0.0
        %269 = vmatpush2.msra.mxu0 0.0
        %270 = vmatprep.subr.mxu0 0.0
        %271 = vmatpush2.msra.mxu0 0.0
        %272 = vmatprep.subr.mxu0 0.0
        %273 = vmatpush2.msra.mxu0 0.0
        %274 = vmatprep.subr.mxu0 0.0
        %275 = vmatpush2.msra.mxu0 0.0
        %276 = vmatprep.subr.mxu0 0.0
        %277 = vmatpush2.msra.mxu0 0.0
        %278 = vmatprep.subr.mxu0 0.0
        %279 = vmatpush2.msra.mxu0 0.0
        %280 = vmatprep.subr.mxu0 0.0
        %281 = vmatpush2.msra.mxu0 0.0
        %282 = vmatprep.subr.mxu0 0.0
        %283 = vmatpush2.msra.mxu0 0.0
        %284 = vmatprep.mubr.f32.mxu0 0.0
        %285 = vmatmul.mubr.f32.gmra.mxu0 %v209
        %v286 = vpop.f32.mrf.mxu0
        %v287 = vadd.f32 0.0, %v286
        %v288 = vpop.f32.mrf.mxu0
        %v289 = vadd.f32 0.0, %v288
        %290 = vmatprep.mubr.f32.mxu0 0.0
        %291 = vmatmul.mubr.f32.gmra.mxu0 %v212
        %v292 = vpop.f32.mrf.mxu0
        %v293 = vadd.f32 0.0, %v292
        %v294 = vpop.f32.mrf.mxu0
        %v295 = vadd.f32 0.0, %v294
        %296 = vmatprep.mubr.f32.mxu0 0.0
        %297 = vmatmul.mubr.f32.gmra.mxu0 %v215
        %v298 = vpop.f32.mrf.mxu0
        %v299 = vadd.f32 0.0, %v298
        %v300 = vpop.f32.mrf.mxu0
        %v301 = vadd.f32 0.0, %v300
        %302 = vmatprep.mubr.f32.mxu0 0.0
        %303 = vmatmul.mubr.f32.gmra.mxu0 %v218
        %v304 = vpop.f32.mrf.mxu0
        %v305 = vadd.f32 0.0, %v304
        %v306 = vpop.f32.mrf.mxu0
        %v307 = vadd.f32 0.0, %v306
        %308 = vdwg.mxu0
        %v309 = vld [vmem:[%s2] sm:$0xff]
        %v310 = vld [vmem:[%s2 + $0x8] sm:$0xff]
        %v311 = vld [vmem:[%s2 + $0x10] sm:$0xff]
        %v312 = vld [vmem:[%s2 + $0x18] sm:$0xff]
        %v313 = vld [vmem:[%s2 + $0x20] sm:$0xff]
        %v314 = vld [vmem:[%s2 + $0x28] sm:$0xff]
        %v315 = vld [vmem:[%s2 + $0x30] sm:$0xff]
        %v316 = vld [vmem:[%s2 + $0x38] sm:$0xff]
        %vm317 = vcmask 64512
        %v319 = vsel %vm317, %v309, 0
        %v322 = vsel %vm317, %v310, 0
        %324 = vmatprep.subr.mxu0 0.0
        %325 = vmatpush1.msra.mxu0 0.0
        %326 = vmatprep.subr.mxu0 0.0
        %327 = vmatpush1.msra.mxu0 0.0
        %328 = vmatprep.subr.mxu0 0.0
        %329 = vmatpush1.msra.mxu0 0.0
        %330 = vmatprep.subr.mxu0 0.0
        %331 = vmatpush1.msra.mxu0 0.0
        %332 = vmatprep.subr.mxu0 0.0
        %333 = vmatpush1.msra.mxu0 0.0
        %334 = vmatprep.subr.mxu0 0.0
        %335 = vmatpush1.msra.mxu0 0.0
        %336 = vmatprep.subr.mxu0 0.0
        %337 = vmatpush1.msra.mxu0 0.0
        %338 = vmatprep.subr.mxu0 0.0
        %339 = vmatpush1.msra.mxu0 0.0
        %340 = vmatprep.subr.mxu0 0.0
        %341 = vmatpush1.msra.mxu0 0.0
        %342 = vmatprep.subr.mxu0 0.0
        %343 = vmatpush1.msra.mxu0 0.0
        %344 = vmatprep.subr.mxu0 0.0
        %345 = vmatpush1.msra.mxu0 0.0
        %346 = vmatprep.subr.mxu0 0.0
        %347 = vmatpush1.msra.mxu0 0.0
        %348 = vmatprep.subr.mxu0 0.0
        %349 = vmatpush1.msra.mxu0 0.0
        %350 = vmatprep.subr.mxu0 0.0
        %351 = vmatpush1.msra.mxu0 0.0
        %352 = vmatprep.subr.mxu0 0.0
        %353 = vmatpush1.msra.mxu0 0.0
        %354 = vmatprep.subr.mxu0 %v289
        %355 = vmatpush1.msra.mxu0 %v287
        %356 = vmatprep.subr.mxu0 0.0
        %357 = vmatpush2.msra.mxu0 0.0
        %358 = vmatprep.subr.mxu0 0.0
        %359 = vmatpush2.msra.mxu0 0.0
        %360 = vmatprep.subr.mxu0 0.0
        %361 = vmatpush2.msra.mxu0 0.0
        %362 = vmatprep.subr.mxu0 0.0
        %363 = vmatpush2.msra.mxu0 0.0
        %364 = vmatprep.subr.mxu0 0.0
        %365 = vmatpush2.msra.mxu0 0.0
        %366 = vmatprep.subr.mxu0 0.0
        %367 = vmatpush2.msra.mxu0 0.0
        %368 = vmatprep.subr.mxu0 0.0
        %369 = vmatpush2.msra.mxu0 0.0
        %370 = vmatprep.subr.mxu0 0.0
        %371 = vmatpush2.msra.mxu0 0.0
        %372 = vmatprep.subr.mxu0 0.0
        %373 = vmatpush2.msra.mxu0 0.0
        %374 = vmatprep.subr.mxu0 0.0
        %375 = vmatpush2.msra.mxu0 0.0
        %376 = vmatprep.subr.mxu0 0.0
        %377 = vmatpush2.msra.mxu0 0.0
        %378 = vmatprep.subr.mxu0 0.0
        %379 = vmatpush2.msra.mxu0 0.0
        %380 = vmatprep.subr.mxu0 0.0
        %381 = vmatpush2.msra.mxu0 0.0
        %382 = vmatprep.subr.mxu0 0.0
        %383 = vmatpush2.msra.mxu0 0.0
        %384 = vmatprep.subr.mxu0 0.0
        %385 = vmatpush2.msra.mxu0 0.0
        %386 = vmatprep.subr.mxu0 0.0
        %387 = vmatpush2.msra.mxu0 0.0
        %388 = vmatprep.mubr.f32.mxu0 0.0
        %389 = vmatmul.mubr.f32.gmra.mxu0 %v319
        %v390 = vpop.f32.mrf.mxu0
        %v391 = vadd.f32 0.0, %v390
        %v392 = vpop.f32.mrf.mxu0
        %v393 = vadd.f32 0.0, %v392
        %394 = vmatprep.mubr.f32.mxu0 0.0
        %395 = vmatmul.mubr.f32.gmra.mxu0 %v322
        %v396 = vpop.f32.mrf.mxu0
        %v397 = vadd.f32 0.0, %v396
        %v398 = vpop.f32.mrf.mxu0
        %v399 = vadd.f32 0.0, %v398
        %400 = vdwg.mxu0
        %v402 = vsel %vm317, %v311, 0
        %v405 = vsel %vm317, %v312, 0
        %407 = vmatprep.subr.mxu0 0.0
        %408 = vmatpush1.msra.mxu0 0.0
        %409 = vmatprep.subr.mxu0 0.0
        %410 = vmatpush1.msra.mxu0 0.0
        %411 = vmatprep.subr.mxu0 0.0
        %412 = vmatpush1.msra.mxu0 0.0
        %413 = vmatprep.subr.mxu0 0.0
        %414 = vmatpush1.msra.mxu0 0.0
        %415 = vmatprep.subr.mxu0 0.0
        %416 = vmatpush1.msra.mxu0 0.0
        %417 = vmatprep.subr.mxu0 0.0
        %418 = vmatpush1.msra.mxu0 0.0
        %419 = vmatprep.subr.mxu0 0.0
        %420 = vmatpush1.msra.mxu0 0.0
        %421 = vmatprep.subr.mxu0 0.0
        %422 = vmatpush1.msra.mxu0 0.0
        %423 = vmatprep.subr.mxu0 0.0
        %424 = vmatpush1.msra.mxu0 0.0
        %425 = vmatprep.subr.mxu0 0.0
        %426 = vmatpush1.msra.mxu0 0.0
        %427 = vmatprep.subr.mxu0 0.0
        %428 = vmatpush1.msra.mxu0 0.0
        %429 = vmatprep.subr.mxu0 0.0
        %430 = vmatpush1.msra.mxu0 0.0
        %431 = vmatprep.subr.mxu0 0.0
        %432 = vmatpush1.msra.mxu0 0.0
        %433 = vmatprep.subr.mxu0 0.0
        %434 = vmatpush1.msra.mxu0 0.0
        %435 = vmatprep.subr.mxu0 0.0
        %436 = vmatpush1.msra.mxu0 0.0
        %437 = vmatprep.subr.mxu0 %v295
        %438 = vmatpush1.msra.mxu0 %v293
        %439 = vmatprep.subr.mxu0 0.0
        %440 = vmatpush2.msra.mxu0 0.0
        %441 = vmatprep.subr.mxu0 0.0
        %442 = vmatpush2.msra.mxu0 0.0
        %443 = vmatprep.subr.mxu0 0.0
        %444 = vmatpush2.msra.mxu0 0.0
        %445 = vmatprep.subr.mxu0 0.0
        %446 = vmatpush2.msra.mxu0 0.0
        %447 = vmatprep.subr.mxu0 0.0
        %448 = vmatpush2.msra.mxu0 0.0
        %449 = vmatprep.subr.mxu0 0.0
        %450 = vmatpush2.msra.mxu0 0.0
        %451 = vmatprep.subr.mxu0 0.0
        %452 = vmatpush2.msra.mxu0 0.0
        %453 = vmatprep.subr.mxu0 0.0
        %454 = vmatpush2.msra.mxu0 0.0
        %455 = vmatprep.subr.mxu0 0.0
        %456 = vmatpush2.msra.mxu0 0.0
        %457 = vmatprep.subr.mxu0 0.0
        %458 = vmatpush2.msra.mxu0 0.0
        %459 = vmatprep.subr.mxu0 0.0
        %460 = vmatpush2.msra.mxu0 0.0
        %461 = vmatprep.subr.mxu0 0.0
        %462 = vmatpush2.msra.mxu0 0.0
        %463 = vmatprep.subr.mxu0 0.0
        %464 = vmatpush2.msra.mxu0 0.0
        %465 = vmatprep.subr.mxu0 0.0
        %466 = vmatpush2.msra.mxu0 0.0
        %467 = vmatprep.subr.mxu0 0.0
        %468 = vmatpush2.msra.mxu0 0.0
        %469 = vmatprep.subr.mxu0 0.0
        %470 = vmatpush2.msra.mxu0 0.0
        %471 = vmatprep.mubr.f32.mxu0 0.0
        %472 = vmatmul.mubr.f32.gmra.mxu0 %v402
        %v473 = vpop.f32.mrf.mxu0
        %v474 = vadd.f32 0.0, %v473
        %v475 = vpop.f32.mrf.mxu0
        %v476 = vadd.f32 0.0, %v475
        %477 = vmatprep.mubr.f32.mxu0 0.0
        %478 = vmatmul.mubr.f32.gmra.mxu0 %v405
        %v479 = vpop.f32.mrf.mxu0
        %v480 = vadd.f32 0.0, %v479
        %v481 = vpop.f32.mrf.mxu0
        %v482 = vadd.f32 0.0, %v481
        %483 = vdwg.mxu0
        %v485 = vsel %vm317, %v313, 0
        %v488 = vsel %vm317, %v314, 0
        %490 = vmatprep.subr.mxu0 0.0
        %491 = vmatpush1.msra.mxu0 0.0
        %492 = vmatprep.subr.mxu0 0.0
        %493 = vmatpush1.msra.mxu0 0.0
        %494 = vmatprep.subr.mxu0 0.0
        %495 = vmatpush1.msra.mxu0 0.0
        %496 = vmatprep.subr.mxu0 0.0
        %497 = vmatpush1.msra.mxu0 0.0
        %498 = vmatprep.subr.mxu0 0.0
        %499 = vmatpush1.msra.mxu0 0.0
        %500 = vmatprep.subr.mxu0 0.0
        %501 = vmatpush1.msra.mxu0 0.0
        %502 = vmatprep.subr.mxu0 0.0
        %503 = vmatpush1.msra.mxu0 0.0
        %504 = vmatprep.subr.mxu0 0.0
        %505 = vmatpush1.msra.mxu0 0.0
        %506 = vmatprep.subr.mxu0 0.0
        %507 = vmatpush1.msra.mxu0 0.0
        %508 = vmatprep.subr.mxu0 0.0
        %509 = vmatpush1.msra.mxu0 0.0
        %510 = vmatprep.subr.mxu0 0.0
        %511 = vmatpush1.msra.mxu0 0.0
        %512 = vmatprep.subr.mxu0 0.0
        %513 = vmatpush1.msra.mxu0 0.0
        %514 = vmatprep.subr.mxu0 0.0
        %515 = vmatpush1.msra.mxu0 0.0
        %516 = vmatprep.subr.mxu0 0.0
        %517 = vmatpush1.msra.mxu0 0.0
        %518 = vmatprep.subr.mxu0 0.0
        %519 = vmatpush1.msra.mxu0 0.0
        %520 = vmatprep.subr.mxu0 %v301
        %521 = vmatpush1.msra.mxu0 %v299
        %522 = vmatprep.subr.mxu0 0.0
        %523 = vmatpush2.msra.mxu0 0.0
        %524 = vmatprep.subr.mxu0 0.0
        %525 = vmatpush2.msra.mxu0 0.0
        %526 = vmatprep.subr.mxu0 0.0
        %527 = vmatpush2.msra.mxu0 0.0
        %528 = vmatprep.subr.mxu0 0.0
        %529 = vmatpush2.msra.mxu0 0.0
        %530 = vmatprep.subr.mxu0 0.0
        %531 = vmatpush2.msra.mxu0 0.0
        %532 = vmatprep.subr.mxu0 0.0
        %533 = vmatpush2.msra.mxu0 0.0
        %534 = vmatprep.subr.mxu0 0.0
        %535 = vmatpush2.msra.mxu0 0.0
        %536 = vmatprep.subr.mxu0 0.0
        %537 = vmatpush2.msra.mxu0 0.0
        %538 = vmatprep.subr.mxu0 0.0
        %539 = vmatpush2.msra.mxu0 0.0
        %540 = vmatprep.subr.mxu0 0.0
        %541 = vmatpush2.msra.mxu0 0.0
        %542 = vmatprep.subr.mxu0 0.0
        %543 = vmatpush2.msra.mxu0 0.0
        %544 = vmatprep.subr.mxu0 0.0
        %545 = vmatpush2.msra.mxu0 0.0
        %546 = vmatprep.subr.mxu0 0.0
        %547 = vmatpush2.msra.mxu0 0.0
        %548 = vmatprep.subr.mxu0 0.0
        %549 = vmatpush2.msra.mxu0 0.0
        %550 = vmatprep.subr.mxu0 0.0
        %551 = vmatpush2.msra.mxu0 0.0
        %552 = vmatprep.subr.mxu0 0.0
        %553 = vmatpush2.msra.mxu0 0.0
        %554 = vmatprep.mubr.f32.mxu0 0.0
        %555 = vmatmul.mubr.f32.gmra.mxu0 %v485
        %v556 = vpop.f32.mrf.mxu0
        %v557 = vadd.f32 0.0, %v556
        %v558 = vpop.f32.mrf.mxu0
        %v559 = vadd.f32 0.0, %v558
        %560 = vmatprep.mubr.f32.mxu0 0.0
        %561 = vmatmul.mubr.f32.gmra.mxu0 %v488
        %v562 = vpop.f32.mrf.mxu0
        %v563 = vadd.f32 0.0, %v562
        %v564 = vpop.f32.mrf.mxu0
        %v565 = vadd.f32 0.0, %v564
        %566 = vdwg.mxu0
        %v568 = vsel %vm317, %v315, 0
        %v571 = vsel %vm317, %v316, 0
        %573 = vmatprep.subr.mxu0 0.0
        %574 = vmatpush1.msra.mxu0 0.0
        %575 = vmatprep.subr.mxu0 0.0
        %576 = vmatpush1.msra.mxu0 0.0
        %577 = vmatprep.subr.mxu0 0.0
        %578 = vmatpush1.msra.mxu0 0.0
        %579 = vmatprep.subr.mxu0 0.0
        %580 = vmatpush1.msra.mxu0 0.0
        %581 = vmatprep.subr.mxu0 0.0
        %582 = vmatpush1.msra.mxu0 0.0
        %583 = vmatprep.subr.mxu0 0.0
        %584 = vmatpush1.msra.mxu0 0.0
        %585 = vmatprep.subr.mxu0 0.0
        %586 = vmatpush1.msra.mxu0 0.0
        %587 = vmatprep.subr.mxu0 0.0
        %588 = vmatpush1.msra.mxu0 0.0
        %589 = vmatprep.subr.mxu0 0.0
        %590 = vmatpush1.msra.mxu0 0.0
        %591 = vmatprep.subr.mxu0 0.0
        %592 = vmatpush1.msra.mxu0 0.0
        %593 = vmatprep.subr.mxu0 0.0
        %594 = vmatpush1.msra.mxu0 0.0
        %595 = vmatprep.subr.mxu0 0.0
        %596 = vmatpush1.msra.mxu0 0.0
        %597 = vmatprep.subr.mxu0 0.0
        %598 = vmatpush1.msra.mxu0 0.0
        %599 = vmatprep.subr.mxu0 0.0
        %600 = vmatpush1.msra.mxu0 0.0
        %601 = vmatprep.subr.mxu0 0.0
        %602 = vmatpush1.msra.mxu0 0.0
        %603 = vmatprep.subr.mxu0 %v307
        %604 = vmatpush1.msra.mxu0 %v305
        %605 = vmatprep.subr.mxu0 0.0
        %606 = vmatpush2.msra.mxu0 0.0
        %607 = vmatprep.subr.mxu0 0.0
        %608 = vmatpush2.msra.mxu0 0.0
        %609 = vmatprep.subr.mxu0 0.0
        %610 = vmatpush2.msra.mxu0 0.0
        %611 = vmatprep.subr.mxu0 0.0
        %612 = vmatpush2.msra.mxu0 0.0
        %613 = vmatprep.subr.mxu0 0.0
        %614 = vmatpush2.msra.mxu0 0.0
        %615 = vmatprep.subr.mxu0 0.0
        %616 = vmatpush2.msra.mxu0 0.0
        %617 = vmatprep.subr.mxu0 0.0
        %618 = vmatpush2.msra.mxu0 0.0
        %619 = vmatprep.subr.mxu0 0.0
        %620 = vmatpush2.msra.mxu0 0.0
        %621 = vmatprep.subr.mxu0 0.0
        %622 = vmatpush2.msra.mxu0 0.0
        %623 = vmatprep.subr.mxu0 0.0
        %624 = vmatpush2.msra.mxu0 0.0
        %625 = vmatprep.subr.mxu0 0.0
        %626 = vmatpush2.msra.mxu0 0.0
        %627 = vmatprep.subr.mxu0 0.0
        %628 = vmatpush2.msra.mxu0 0.0
        %629 = vmatprep.subr.mxu0 0.0
        %630 = vmatpush2.msra.mxu0 0.0
        %631 = vmatprep.subr.mxu0 0.0
        %632 = vmatpush2.msra.mxu0 0.0
        %633 = vmatprep.subr.mxu0 0.0
        %634 = vmatpush2.msra.mxu0 0.0
        %635 = vmatprep.subr.mxu0 0.0
        %636 = vmatpush2.msra.mxu0 0.0
        %637 = vmatprep.mubr.f32.mxu0 0.0
        %638 = vmatmul.mubr.f32.gmra.mxu0 %v568
        %v639 = vpop.f32.mrf.mxu0
        %v640 = vadd.f32 0.0, %v639
        %v641 = vpop.f32.mrf.mxu0
        %v642 = vadd.f32 0.0, %v641
        %643 = vmatprep.mubr.f32.mxu0 0.0
        %644 = vmatmul.mubr.f32.gmra.mxu0 %v571
        %v645 = vpop.f32.mrf.mxu0
        %v646 = vadd.f32 0.0, %v645
        %v647 = vpop.f32.mrf.mxu0
        %v648 = vadd.f32 0.0, %v647
        %649 = vdwg.mxu0
        %650 = vst [vmem:[%s179] sm:$0xff] %v391
        %651 = vst [vmem:[%s179 + $0x8] sm:$0xff] %v393
        %652 = vst [vmem:[%s179 + $0x10] sm:$0xff] %v397
        %653 = vst [vmem:[%s179 + $0x18] sm:$0xff] %v399
        %654 = vst [vmem:[%s179 + $0x20] sm:$0xff] %v474
        %655 = vst [vmem:[%s179 + $0x28] sm:$0xff] %v476
        %656 = vst [vmem:[%s179 + $0x30] sm:$0xff] %v480
        %657 = vst [vmem:[%s179 + $0x38] sm:$0xff] %v482
        %658 = vst [vmem:[%s179 + $0x40] sm:$0xff] %v557
        %659 = vst [vmem:[%s179 + $0x48] sm:$0xff] %v559
        %660 = vst [vmem:[%s179 + $0x50] sm:$0xff] %v563
        %661 = vst [vmem:[%s179 + $0x58] sm:$0xff] %v565
        %662 = vst [vmem:[%s179 + $0x60] sm:$0xff] %v640
        %663 = vst [vmem:[%s179 + $0x68] sm:$0xff] %v642
        %664 = vst [vmem:[%s179 + $0x70] sm:$0xff] %v646
        %665 = vst [vmem:[%s179 + $0x78] sm:$0xff] %v648
        %s666 = sand.u32 %s94, 1
        %s667 = scalar_lea.sflag [#allocation4], %s666
        %s668 = sand.u32 %s94, 1
        %s669 = smul.addr %s668, 128
        %s670 = scalar_lea.vmem [#allocation5], %s669
        // Predicated region
        $region37: #{tpu_custom_call.1} parent=31 // pred_check
          %p671 = pneg %p104
        $region38: #{tpu_custom_call.1} parent=31 // pred_check_branch
          %673 = sbr.rel (%p671) target = $region40
        $region39: #{tpu_custom_call.1} parent=31 // pred_region
          %s674 = smul.u32 8, %s18
          %s676 = ssub.s32 2048, 2048
          %677 = vsyncadd %s667, %s676
          %s678 = smul.addr %s674, 2
          %s679 = smul.addr %s678, 128
          %s680 = scalar_lea.hbm %s3, %s679
          %s681 = sshll.u32 %s670, 4
          %s682 = int_to_ptr.vmem [resolvable:$true] %s681
          %687 = dma.vmem_to_hbm [thread:$0]  %s682, 2048, %s680, %s667, 256, 256, 16
        $region40: #{tpu_custom_call.1} parent=31 // pred_fallthru
          _
      $region32: #{tpu_custom_call.1} parent=5 // pred_fallthru
        _
      %p688 = scmp.le.s32.totalorder 2, %s13
      // Predicated region
      $region41: #{tpu_custom_call.1} parent=5 // pred_check
        %p689 = pneg %p688
      $region42: #{tpu_custom_call.1} parent=5 // pred_check_branch
        %691 = sbr.rel (%p689) target = $region44
      $region43: #{tpu_custom_call.1} parent=5 // pred_region
        %s692 = ssub.s32 %s13, 2
        // Predicated region
        $region45: #{tpu_custom_call.1} parent=43 // pred_check
          %p693 = pneg %p110
        $region46: #{tpu_custom_call.1} parent=43 // pred_check_branch
          %695 = sbr.rel (%p693) target = $region48
        $region47: #{tpu_custom_call.1} parent=43 // pred_region
          %s696 = sand.u32 %s95, 1
          %s697 = scalar_lea.sflag [#allocation4], %s696
          %s698 = sand.u32 %s95, 1
          %s699 = smul.addr %s698, 128
          %s700 = scalar_lea.vmem [#allocation5], %s699
          %701 = dma.done %s697, 2048
        $region48: #{tpu_custom_call.1} parent=43 // pred_fallthru
          _
      $region44: #{tpu_custom_call.1} parent=5 // pred_fallthru
        _
    $region6: #{tpu_custom_call.1} parent=1 // loop_footer
      %s17 = sadd.s32 1, %s13
    $region7: #{tpu_custom_call.1} parent=1 // loop_footer_branch
      %12 = sbr.rel target = $region3
    $region8: #{tpu_custom_call.1} parent=1 // loop_exit
      _
    %702 = vsyncpa [#allocation3], 1
    %s703 = scalar_lea.sflag [#allocation3], 1
    %704 = vsyncpa %s703, 1
    %705 = vsyncpa [#allocation4], 1
    %s706 = scalar_lea.sflag [#allocation4], 1
    %707 = vsyncpa %s706, 1

</llo_original>
